<compile_context>
chip_gen: v7x
topology: tpu7x:2x2x1
jax: 0.10.0
libtpu: 0.0.40
codegen_flags: <defaults>
</compile_context>

<pallas_src>
import jax
import jax.numpy as jnp
from jax.experimental import pallas as pl
from jax.experimental.pallas import tpu as pltpu


# ----------------- fused Pallas kernel -----------------

def _make_fused_kernel(num_layers, dp):
    """Build the fused forward kernel for a given layer count and padded width."""

    def kernel(*refs):
        a_ref, x_ref, p_ref = refs[:3]
        layer_refs = refs[3:3 + 2 * num_layers]
        w1_ref, b1_ref, w2_ref, b2_ref = refs[3 + 2 * num_layers:7 + 2 * num_layers]
        out_ref = refs[7 + 2 * num_layers]
        cat_ref = refs[8 + 2 * num_layers]   # [Np, 2*dp]  scratch for [agg | h]
        xcat_ref = refs[9 + 2 * num_layers]  # [Np, L*dp]  scratch for layer concat

        a = a_ref[...]          # [Np, Np] bf16 -- read once, reused for every layer
        h = x_ref[...]          # [Np, dp] f32
        for l in range(num_layers):
            w_ref = layer_refs[2 * l]
            b_ref = layer_refs[2 * l + 1]
            # mean neighbor aggregation on the MXU (bf16 inputs, f32 accumulation)
            agg = jnp.dot(a, h.astype(jnp.bfloat16),
                          preferred_element_type=jnp.float32)
            # merged projection: one K = 2*dp matmul instead of two shallow dots
            cat_ref[:, :dp] = agg
            cat_ref[:, dp:2 * dp] = h
            h = (jnp.dot(cat_ref[...], w_ref[...],
                         preferred_element_type=jnp.float32) + b_ref[...])
            xcat_ref[:, l * dp:(l + 1) * dp] = h

        # global mean pool -> fc1 -> relu -> fc2 -> sigmoid
        pooled = jnp.dot(p_ref[...], xcat_ref[...],
                         preferred_element_type=jnp.float32)
        z = jnp.maximum(
            jnp.dot(pooled, w1_ref[...], preferred_element_type=jnp.float32)
            + b1_ref[...], 0.0)
        logits = (jnp.dot(z, w2_ref[...], preferred_element_type=jnp.float32)
                  + b2_ref[...])
        out_ref[...] = jax.nn.sigmoid(logits).astype(out_ref.dtype)

    return kernel


# ----------------- wrapper -----------------

def _round_up(v, m):
    return ((v + m - 1) // m) * m


def graphsage_forward(x, edge_index, batch, params, num_graphs):
    """x: [N, F] f32, edge_index: [2, E] int32 (row0 = src j, row1 = dst i),
    batch: [N] int32 graph id per node."""
    n, f = x.shape
    num_layers = len(params["layers"])
    dim_embedding = params["layers"][0][0].shape[1]
    dim_target = params["w2"].shape[1]

    np_ = _round_up(max(n, 128), 128)        # node dim: lane-dense A, fills MXU
    dp = 128                                  # every feature slab = one full vreg of lanes
    gp = _round_up(max(num_graphs, 8), 8)     # graph dim: sublane multiple

    # ---- dense mean-aggregation matrix at padded size, bf16 for MXU/HBM ----
    src, dst = edge_index[0], edge_index[1]
    adj = jnp.zeros((np_, np_), jnp.float32).at[dst, src].add(1.0)
    deg = adj.sum(axis=1, keepdims=True)
    a_mat = (adj / jnp.maximum(deg, 1.0)).astype(jnp.bfloat16)

    # ---- global mean-pool matrix (padded nodes/graphs contribute zero) ----
    batch_p = jnp.full((np_,), -1, jnp.int32).at[:n].set(batch)
    p_mat = (batch_p[None, :] == jnp.arange(gp, dtype=jnp.int32)[:, None]
             ).astype(jnp.float32)
    p_mat = p_mat / jnp.maximum(p_mat.sum(axis=1, keepdims=True), 1.0)

    # ---- lane-dense padded inputs / weights ----
    x_p = jnp.zeros((np_, dp), jnp.float32).at[:n, :f].set(x)

    layer_ops = []
    for (wl, wr, b) in params["layers"]:
        din = wl.shape[0]
        w_stack = (jnp.zeros((2 * dp, dp), jnp.float32)
                   .at[:din, :dim_embedding].set(wl)            # lin_l (neighbors)
                   .at[dp:dp + din, :dim_embedding].set(wr))    # lin_r (root)
        b_p = jnp.zeros((1, dp), jnp.float32).at[0, :dim_embedding].set(b)
        layer_ops += [w_stack, b_p]

    w1_p = jnp.zeros((num_layers * dp, dp), jnp.float32)
    for l in range(num_layers):
        w1_p = w1_p.at[l * dp:l * dp + dim_embedding, :dim_embedding].set(
            params["w1"][l * dim_embedding:(l + 1) * dim_embedding, :])
    b1_p = jnp.zeros((1, dp), jnp.float32).at[0, :dim_embedding].set(params["b1"])
    w2_p = jnp.zeros((dp, dp), jnp.float32).at[:dim_embedding, :dim_target].set(params["w2"])
    b2_p = jnp.zeros((1, dp), jnp.float32).at[0, :dim_target].set(params["b2"])

    n_inputs = 3 + 2 * num_layers + 4
    out_p = pl.pallas_call(
        _make_fused_kernel(num_layers, dp),
        out_shape=jax.ShapeDtypeStruct((gp, dp), jnp.float32),
        in_specs=[pl.BlockSpec(memory_space=pltpu.MemorySpace.VMEM)] * n_inputs,
        out_specs=pl.BlockSpec(memory_space=pltpu.MemorySpace.VMEM),
        scratch_shapes=[
            pltpu.VMEM((np_, 2 * dp), jnp.float32),           # [agg | h]
            pltpu.VMEM((np_, num_layers * dp), jnp.float32),  # xcat
        ],
        compiler_params=pltpu.CompilerParams(vmem_limit_bytes=32 * 1024 * 1024),
    )(a_mat, x_p, p_mat, *layer_ops, w1_p, b1_p, w2_p, b2_p)

    return out_p[:num_graphs, :dim_target]


# ----------------- pure-JAX f32 reference (for validation) -----------------

def reference_forward(x, edge_index, batch, params, num_graphs):
    n = x.shape[0]
    src, dst = edge_index[0], edge_index[1]
    adj = jnp.zeros((n, n), jnp.float32).at[dst, src].add(1.0)
    a = adj / jnp.maximum(adj.sum(axis=1, keepdims=True), 1.0)
    p = (batch[None, :] == jnp.arange(num_graphs)[:, None]).astype(jnp.float32)
    p = p / jnp.maximum(p.sum(axis=1, keepdims=True), 1.0)
    h = x
    parts = []
    for (wl, wr, b) in params["layers"]:
        h = (a @ h) @ wl + h @ wr + b
        parts.append(h)
    xcat = jnp.concatenate(parts, axis=1)
    pooled = p @ xcat
    z = jax.nn.relu(pooled @ params["w1"] + params["b1"])
    return jax.nn.sigmoid(z @ params["w2"] + params["b2"])


# ----------------- deterministic parameter init -----------------

def init_params(key, dim_features, dim_embedding, dim_target, num_layers):
    params = {"layers": []}
    for i in range(num_layers):
        din = dim_features if i == 0 else dim_embedding
        key, k1, k2, k3 = jax.random.split(key, 4)
        wl = jax.random.normal(k1, (din, dim_embedding), jnp.float32) * 0.1  # lin_l
        wr = jax.random.normal(k2, (din, dim_embedding), jnp.float32) * 0.1  # lin_r
        b = jax.random.normal(k3, (dim_embedding,), jnp.float32) * 0.1
        params["layers"].append((wl, wr, b))
    key, k1, k2, k3, k4 = jax.random.split(key, 5)
    params["w1"] = jax.random.normal(k1, (num_layers * dim_embedding, dim_embedding),
                                     jnp.float32) * 0.1
    params["b1"] = jax.random.normal(k2, (dim_embedding,), jnp.float32) * 0.1
    params["w2"] = jax.random.normal(k3, (dim_embedding, dim_target), jnp.float32) * 0.1
    params["b2"] = jax.random.normal(k4, (dim_target,), jnp.float32) * 0.1
    return params


# ----------------- main -----------------

if __name__ == "__main__":
    key = jax.random.PRNGKey(0)

    # Batch 4 graphs x 32 nodes = 128 nodes (fills the padded node dim exactly).
    nodes_per_graph = 32
    num_graphs = 4
    N = nodes_per_graph * num_graphs
    edges_per_graph = 64
    dim_features = 8
    dim_embedding = 32
    dim_target = 4
    num_layers = 2

    key, kx = jax.random.split(key)
    x = jax.random.normal(kx, (N, dim_features), jnp.float32)

    srcs, dsts = [], []
    for g in range(num_graphs):
        key, k1, k2 = jax.random.split(key, 3)
        srcs.append(jax.random.randint(k1, (edges_per_graph,), 0, nodes_per_graph,
                                       jnp.int32) + g * nodes_per_graph)
        dsts.append(jax.random.randint(k2, (edges_per_graph,), 0, nodes_per_graph,
                                       jnp.int32) + g * nodes_per_graph)
    edge_index = jnp.stack([jnp.concatenate(srcs), jnp.concatenate(dsts)], axis=0)
    batch = jnp.repeat(jnp.arange(num_graphs, dtype=jnp.int32), nodes_per_graph)

    params = init_params(key, dim_features, dim_embedding, dim_target, num_layers)

    out = graphsage_forward(x, edge_index, batch, params, num_graphs)
    out = jax.block_until_ready(out)

    ref = reference_forward(x, edge_index, batch, params, num_graphs)
    assert out.shape == (num_graphs, dim_target)
    assert bool(jnp.all((out >= 0.0) & (out <= 1.0)))
    assert bool(jnp.allclose(out, ref, atol=2e-2)), "mismatch vs f32 reference"
    print("KERNEL_OK")
</pallas_src>

<mosaic_0001>
module attributes {stable_mosaic.version = 11 : i64} {
  func.func @kernel(%arg0: memref<128x128xbf16, #tpu.memory_space<vmem>>, %arg1: memref<128x128xf32, #tpu.memory_space<vmem>>, %arg2: memref<8x128xf32, #tpu.memory_space<vmem>>, %arg3: memref<256x128xf32, #tpu.memory_space<vmem>>, %arg4: memref<1x128xf32, #tpu.memory_space<vmem>>, %arg5: memref<256x128xf32, #tpu.memory_space<vmem>>, %arg6: memref<1x128xf32, #tpu.memory_space<vmem>>, %arg7: memref<256x128xf32, #tpu.memory_space<vmem>>, %arg8: memref<1x128xf32, #tpu.memory_space<vmem>>, %arg9: memref<128x128xf32, #tpu.memory_space<vmem>>, %arg10: memref<1x128xf32, #tpu.memory_space<vmem>>, %arg11: memref<8x128xf32, #tpu.memory_space<vmem>>, %arg12: memref<128x256xf32, #tpu.memory_space<vmem>>, %arg13: memref<128x256xf32, #tpu.memory_space<vmem>>) attributes {dimension_semantics = [], scalar_prefetch = 0 : i64, scratch_operands = 2 : i64, tpu.core_type = #tpu.core_type<tc>} {
    %c0 = arith.constant 0 : index
    %c0_0 = arith.constant 0 : index
    %0 = vector.load %arg0[%c0, %c0_0] : memref<128x128xbf16, #tpu.memory_space<vmem>>, vector<128x128xbf16>
    %c0_1 = arith.constant 0 : index
    %c0_2 = arith.constant 0 : index
    %1 = vector.load %arg1[%c0_1, %c0_2] : memref<128x128xf32, #tpu.memory_space<vmem>>, vector<128x128xf32>
    %2 = arith.truncf %1 : vector<128x128xf32> to vector<128x128xbf16>
    %cst = arith.constant dense<0.000000e+00> : vector<128x128xf32>
    %3 = tpu.matmul %0, %2, %cst {dimension_numbers = #tpu.dot_dimension_numbers<[1], [0], [0], [1], [0, 0, 1, 1], [], []>} : vector<128x128xbf16>, vector<128x128xbf16>, vector<128x128xf32> -> vector<128x128xf32>
    %c0_3 = arith.constant 0 : index
    %c0_4 = arith.constant 0 : index
    %4 = vector.load %arg12[%c0_3, %c0_4] : memref<128x256xf32, #tpu.memory_space<vmem>>, vector<128x128xf32>
    tpu.vector_store %arg12[%c0_3, %c0_4], %3 {strides = array<i32>} : memref<128x256xf32, #tpu.memory_space<vmem>>, vector<128x128xf32>,
    %c0_5 = arith.constant 0 : index
    %c128 = arith.constant 128 : index
    %5 = vector.load %arg12[%c0_5, %c128] : memref<128x256xf32, #tpu.memory_space<vmem>>, vector<128x128xf32>
    tpu.vector_store %arg12[%c0_5, %c128], %1 {strides = array<i32>} : memref<128x256xf32, #tpu.memory_space<vmem>>, vector<128x128xf32>,
    %c0_6 = arith.constant 0 : index
    %c0_7 = arith.constant 0 : index
    %6 = vector.load %arg12[%c0_6, %c0_7] : memref<128x256xf32, #tpu.memory_space<vmem>>, vector<128x256xf32>
    %c0_8 = arith.constant 0 : index
    %c0_9 = arith.constant 0 : index
    %7 = vector.load %arg3[%c0_8, %c0_9] : memref<256x128xf32, #tpu.memory_space<vmem>>, vector<256x128xf32>
    %cst_10 = arith.constant dense<0.000000e+00> : vector<128x128xf32>
    %8 = tpu.matmul %6, %7, %cst_10 {dimension_numbers = #tpu.dot_dimension_numbers<[1], [0], [0], [1], [0, 0, 1, 1], [], []>} : vector<128x256xf32>, vector<256x128xf32>, vector<128x128xf32> -> vector<128x128xf32>
    %c0_11 = arith.constant 0 : index
    %c0_12 = arith.constant 0 : index
    %9 = vector.load %arg4[%c0_11, %c0_12] : memref<1x128xf32, #tpu.memory_space<vmem>>, vector<1x128xf32>
    %10 = vector.broadcast %9 : vector<1x128xf32> to vector<128x128xf32>
    %11 = arith.addf %8, %10 : vector<128x128xf32>
    %c0_13 = arith.constant 0 : index
    %c0_14 = arith.constant 0 : index
    %12 = vector.load %arg13[%c0_13, %c0_14] : memref<128x256xf32, #tpu.memory_space<vmem>>, vector<128x128xf32>
    tpu.vector_store %arg13[%c0_13, %c0_14], %11 {strides = array<i32>} : memref<128x256xf32, #tpu.memory_space<vmem>>, vector<128x128xf32>,
    %13 = arith.truncf %11 : vector<128x128xf32> to vector<128x128xbf16>
    %cst_15 = arith.constant dense<0.000000e+00> : vector<128x128xf32>
    %14 = tpu.matmul %0, %13, %cst_15 {dimension_numbers = #tpu.dot_dimension_numbers<[1], [0], [0], [1], [0, 0, 1, 1], [], []>} : vector<128x128xbf16>, vector<128x128xbf16>, vector<128x128xf32> -> vector<128x128xf32>
    %c0_16 = arith.constant 0 : index
    %c0_17 = arith.constant 0 : index
    %15 = vector.load %arg12[%c0_16, %c0_17] : memref<128x256xf32, #tpu.memory_space<vmem>>, vector<128x128xf32>
    tpu.vector_store %arg12[%c0_16, %c0_17], %14 {strides = array<i32>} : memref<128x256xf32, #tpu.memory_space<vmem>>, vector<128x128xf32>,
    %c0_18 = arith.constant 0 : index
    %c128_19 = arith.constant 128 : index
    %16 = vector.load %arg12[%c0_18, %c128_19] : memref<128x256xf32, #tpu.memory_space<vmem>>, vector<128x128xf32>
    tpu.vector_store %arg12[%c0_18, %c128_19], %11 {strides = array<i32>} : memref<128x256xf32, #tpu.memory_space<vmem>>, vector<128x128xf32>,
    %c0_20 = arith.constant 0 : index
    %c0_21 = arith.constant 0 : index
    %17 = vector.load %arg12[%c0_20, %c0_21] : memref<128x256xf32, #tpu.memory_space<vmem>>, vector<128x256xf32>
    %c0_22 = arith.constant 0 : index
    %c0_23 = arith.constant 0 : index
    %18 = vector.load %arg5[%c0_22, %c0_23] : memref<256x128xf32, #tpu.memory_space<vmem>>, vector<256x128xf32>
    %cst_24 = arith.constant dense<0.000000e+00> : vector<128x128xf32>
    %19 = tpu.matmul %17, %18, %cst_24 {dimension_numbers = #tpu.dot_dimension_numbers<[1], [0], [0], [1], [0, 0, 1, 1], [], []>} : vector<128x256xf32>, vector<256x128xf32>, vector<128x128xf32> -> vector<128x128xf32>
    %c0_25 = arith.constant 0 : index
    %c0_26 = arith.constant 0 : index
    %20 = vector.load %arg6[%c0_25, %c0_26] : memref<1x128xf32, #tpu.memory_space<vmem>>, vector<1x128xf32>
    %21 = vector.broadcast %20 : vector<1x128xf32> to vector<128x128xf32>
    %22 = arith.addf %19, %21 : vector<128x128xf32>
    %c0_27 = arith.constant 0 : index
    %c128_28 = arith.constant 128 : index
    %23 = vector.load %arg13[%c0_27, %c128_28] : memref<128x256xf32, #tpu.memory_space<vmem>>, vector<128x128xf32>
    tpu.vector_store %arg13[%c0_27, %c128_28], %22 {strides = array<i32>} : memref<128x256xf32, #tpu.memory_space<vmem>>, vector<128x128xf32>,
    %c0_29 = arith.constant 0 : index
    %c0_30 = arith.constant 0 : index
    %24 = vector.load %arg2[%c0_29, %c0_30] : memref<8x128xf32, #tpu.memory_space<vmem>>, vector<8x128xf32>
    %c0_31 = arith.constant 0 : index
    %c0_32 = arith.constant 0 : index
    %25 = vector.load %arg13[%c0_31, %c0_32] : memref<128x256xf32, #tpu.memory_space<vmem>>, vector<128x256xf32>
    %cst_33 = arith.constant dense<0.000000e+00> : vector<8x256xf32>
    %26 = tpu.matmul %24, %25, %cst_33 {dimension_numbers = #tpu.dot_dimension_numbers<[1], [0], [0], [1], [0, 0, 1, 1], [], []>} : vector<8x128xf32>, vector<128x256xf32>, vector<8x256xf32> -> vector<8x256xf32>
    %c0_34 = arith.constant 0 : index
    %c0_35 = arith.constant 0 : index
    %27 = vector.load %arg7[%c0_34, %c0_35] : memref<256x128xf32, #tpu.memory_space<vmem>>, vector<256x128xf32>
    %cst_36 = arith.constant dense<0.000000e+00> : vector<8x128xf32>
    %28 = tpu.matmul %26, %27, %cst_36 {dimension_numbers = #tpu.dot_dimension_numbers<[1], [0], [0], [1], [0, 0, 1, 1], [], []>} : vector<8x256xf32>, vector<256x128xf32>, vector<8x128xf32> -> vector<8x128xf32>
    %c0_37 = arith.constant 0 : index
    %c0_38 = arith.constant 0 : index
    %29 = vector.load %arg8[%c0_37, %c0_38] : memref<1x128xf32, #tpu.memory_space<vmem>>, vector<1x128xf32>
    %30 = vector.broadcast %29 : vector<1x128xf32> to vector<8x128xf32>
    %31 = arith.addf %28, %30 : vector<8x128xf32>
    %cst_39 = arith.constant 0.000000e+00 : f32
    %32 = vector.broadcast %cst_39 : f32 to vector<8x128xf32>
    %33 = arith.maximumf %31, %32 : vector<8x128xf32>
    %c0_40 = arith.constant 0 : index
    %c0_41 = arith.constant 0 : index
    %34 = vector.load %arg9[%c0_40, %c0_41] : memref<128x128xf32, #tpu.memory_space<vmem>>, vector<128x128xf32>
    %cst_42 = arith.constant dense<0.000000e+00> : vector<8x128xf32>
    %35 = tpu.matmul %33, %34, %cst_42 {dimension_numbers = #tpu.dot_dimension_numbers<[1], [0], [0], [1], [0, 0, 1, 1], [], []>} : vector<8x128xf32>, vector<128x128xf32>, vector<8x128xf32> -> vector<8x128xf32>
    %c0_43 = arith.constant 0 : index
    %c0_44 = arith.constant 0 : index
    %36 = vector.load %arg10[%c0_43, %c0_44] : memref<1x128xf32, #tpu.memory_space<vmem>>, vector<1x128xf32>
    %37 = vector.broadcast %36 : vector<1x128xf32> to vector<8x128xf32>
    %38 = arith.addf %35, %37 : vector<8x128xf32>
    %39 = arith.negf %38 : vector<8x128xf32>
    %40 = math.exp %39 : vector<8x128xf32>
    %cst_45 = arith.constant 1.000000e+00 : f32
    %41 = vector.broadcast %cst_45 : f32 to vector<8x128xf32>
    %42 = arith.addf %41, %40 : vector<8x128xf32>
    %43 = arith.divf %41, %42 : vector<8x128xf32>
    %c0_46 = arith.constant 0 : index
    %c0_47 = arith.constant 0 : index
    %44 = vector.load %arg11[%c0_46, %c0_47] : memref<8x128xf32, #tpu.memory_space<vmem>>, vector<8x128xf32>
    tpu.vector_store %arg11[%c0_46, %c0_47], %43 {strides = array<i32>} : memref<8x128xf32, #tpu.memory_space<vmem>>, vector<8x128xf32>,
    return
  }
}

</mosaic_0001>

<llo_original>
// kernel: tpu_custom_call.1
$region0: #{tpu_custom_call.1}
  #allocation0 [shape = 'u32[]', space=smem, size = 0x4, offset = 0x4, fixed_abs, tag = 'smem constant byte address 0x4 - core index']
  #allocation1 [shape = 'u32[144,128]{1,0:T(1,128)}', space=vmem, size = 0x12000, scoped, tag = 'internal scratch']
  #allocation2 [shape = 'f32[128,256]{1,0:T(8,128)}', space=vmem, size = 0x20000, scoped, tag = 'scratch operand']
  #allocation3 [shape = 'f32[128,256]{1,0:T(8,128)}', space=vmem, size = 0x20000, scoped, tag = 'scratch operand']
  %s0 = inlined_call_operand.hbm [shape: bf16[128,128], index: 0, kind: input, shape index: {}]
  %s1 = inlined_call_operand.hbm [shape: f32[128,128], index: 1, kind: input, shape index: {}]
  %s2 = inlined_call_operand.hbm [shape: f32[8,128], index: 2, kind: input, shape index: {}]
  %s3 = inlined_call_operand.hbm [shape: f32[256,128], index: 3, kind: input, shape index: {}]
  %s4 = inlined_call_operand.vmem [shape: f32[1,128], index: 4, kind: input, shape index: {}]
  %s5 = inlined_call_operand.hbm [shape: f32[256,128], index: 5, kind: input, shape index: {}]
  %s6 = inlined_call_operand.vmem [shape: f32[1,128], index: 6, kind: input, shape index: {}]
  %s7 = inlined_call_operand.hbm [shape: f32[256,128], index: 7, kind: input, shape index: {}]
  %s8 = inlined_call_operand.vmem [shape: f32[1,128], index: 8, kind: input, shape index: {}]
  %s9 = inlined_call_operand.hbm [shape: f32[128,128], index: 9, kind: input, shape index: {}]
  %s10 = inlined_call_operand.vmem [shape: f32[1,128], index: 10, kind: input, shape index: {}]
  %s11 = inlined_call_operand.hbm [shape: f32[8,128], index: 11, kind: output, shape index: {}]
  %s12 = sld [smem:[#allocation0]]
  $region82: #{tpu_custom_call.1} parent=0
    _
  %s14 = ssub.s32 1, %s12
  %s15 = scalar_select 0, %s14, %s12
  $region1: #{tpu_custom_call.1} parent=0
    #allocation4 [shape = 'u8[32768]{0}', space=vmem, size = 0x8000, scoped, tag = 'input window, operand 0, single buffered']
    #allocation5 [shape = 's32[1]{0}', space=sflag, size = 0x4, scoped, tag = 'scoped memory for tpu_custom_call.1']
    #allocation6 [shape = 's32[1]{0}', space=sflag, size = 0x4, scoped, tag = 'scoped memory for tpu_custom_call.1']
    #allocation7 [shape = 'u8[65536]{0}', space=vmem, size = 0x10000, scoped, tag = 'input window, operand 1, single buffered']
    #allocation8 [shape = 's32[1]{0}', space=sflag, size = 0x4, scoped, tag = 'scoped memory for tpu_custom_call.1']
    #allocation9 [shape = 'u8[4096]{0}', space=vmem, size = 0x1000, scoped, tag = 'input window, operand 2, single buffered']
    #allocation10 [shape = 'u8[131072]{0}', space=vmem, size = 0x20000, scoped, tag = 'input window, operand 3, single buffered']
    #allocation11 [shape = 's32[1]{0}', space=sflag, size = 0x4, scoped, tag = 'scoped memory for tpu_custom_call.1']
    #allocation12 [shape = 'u8[131072]{0}', space=vmem, size = 0x20000, scoped, tag = 'input window, operand 5, single buffered']
    #allocation13 [shape = 'u8[131072]{0}', space=vmem, size = 0x20000, scoped, tag = 'input window, operand 7, single buffered']
    #allocation14 [shape = 's32[1]{0}', space=sflag, size = 0x4, scoped, tag = 'scoped memory for tpu_custom_call.1']
    #allocation15 [shape = 'u8[65536]{0}', space=vmem, size = 0x10000, scoped, tag = 'input window, operand 9, single buffered']
    #allocation16 [shape = 'u8[4096]{0}', space=vmem, size = 0x1000, scoped, tag = 'output window, operand 0, single buffered']
    %16 = vsyncpa [#allocation5], 0
    %17 = vsyncpa [#allocation8], 0
    %18 = vsyncpa [#allocation11], 0
    %19 = vsyncpa [#allocation14], 0
    %20 = vsyncpa [#allocation6], 0
    // Predicated region
    $region2: #{tpu_custom_call.1} parent=1 // pred_check
      _
    $region3: #{tpu_custom_call.1} parent=1 // pred_check_branch
      %22 = sbr.rel (0) target = $region5
    $region4: #{tpu_custom_call.1} parent=1 // pred_region
      %s24 = ssub.s32 1024, 1024
      %25 = vsyncadd [#allocation5], %s24
      %s26 = sshll.u32 [#allocation4], 4
      %s27 = int_to_ptr.vmem [resolvable:$true] %s26
      %32 = dma.hbm_to_vmem [thread:$0]  %s0, 1024, %s27, [#allocation5], 64, 64, 4
    $region5: #{tpu_custom_call.1} parent=1 // pred_fallthru
      _
    // Predicated region
    $region6: #{tpu_custom_call.1} parent=1 // pred_check
      _
    $region7: #{tpu_custom_call.1} parent=1 // pred_check_branch
      %34 = sbr.rel (0) target = $region9
    $region8: #{tpu_custom_call.1} parent=1 // pred_region
      %s36 = ssub.s32 2048, 2048
      %37 = vsyncadd [#allocation8], %s36
      %s38 = sshll.u32 [#allocation7], 4
      %s39 = int_to_ptr.vmem [resolvable:$true] %s38
      %44 = dma.hbm_to_vmem [thread:$0]  %s1, 2048, %s39, [#allocation8], 128, 128, 8
    $region9: #{tpu_custom_call.1} parent=1 // pred_fallthru
      _
    // Predicated region
    $region10: #{tpu_custom_call.1} parent=1 // pred_check
      _
    $region11: #{tpu_custom_call.1} parent=1 // pred_check_branch
      %46 = sbr.rel (0) target = $region13
    $region12: #{tpu_custom_call.1} parent=1 // pred_region
      %s48 = ssub.s32 128, 128
      %49 = vsyncadd [#allocation8], %s48
      %s51 = sshll.u32 [#allocation9], 4
      %s52 = int_to_ptr.vmem [resolvable:$true] %s51
      %54 = dma.hbm_to_vmem [thread:$0]  %s2, 128, %s52, [#allocation8]
    $region13: #{tpu_custom_call.1} parent=1 // pred_fallthru
      _
    // Predicated region
    $region14: #{tpu_custom_call.1} parent=1 // pred_check
      _
    $region15: #{tpu_custom_call.1} parent=1 // pred_check_branch
      %56 = sbr.rel (0) target = $region17
    $region16: #{tpu_custom_call.1} parent=1 // pred_region
      %s58 = ssub.s32 4096, 4096
      %59 = vsyncadd [#allocation11], %s58
      %s60 = sshll.u32 [#allocation10], 4
      %s61 = int_to_ptr.vmem [resolvable:$true] %s60
      %66 = dma.hbm_to_vmem [thread:$0]  %s3, 4096, %s61, [#allocation11], 128, 128, 8
    $region17: #{tpu_custom_call.1} parent=1 // pred_fallthru
      _
    // Predicated region
    $region18: #{tpu_custom_call.1} parent=1 // pred_check
      _
    $region19: #{tpu_custom_call.1} parent=1 // pred_check_branch
      %68 = sbr.rel (0) target = $region21
    $region20: #{tpu_custom_call.1} parent=1 // pred_region
      _
    $region21: #{tpu_custom_call.1} parent=1 // pred_fallthru
      _
    // Predicated region
    $region22: #{tpu_custom_call.1} parent=1 // pred_check
      _
    $region23: #{tpu_custom_call.1} parent=1 // pred_check_branch
      %70 = sbr.rel (0) target = $region25
    $region24: #{tpu_custom_call.1} parent=1 // pred_region
      %s72 = ssub.s32 4096, 4096
      %73 = vsyncadd [#allocation11], %s72
      %s74 = sshll.u32 [#allocation12], 4
      %s75 = int_to_ptr.vmem [resolvable:$true] %s74
      %80 = dma.hbm_to_vmem [thread:$0]  %s5, 4096, %s75, [#allocation11], 128, 128, 8
    $region25: #{tpu_custom_call.1} parent=1 // pred_fallthru
      _
    // Predicated region
    $region26: #{tpu_custom_call.1} parent=1 // pred_check
      _
    $region27: #{tpu_custom_call.1} parent=1 // pred_check_branch
      %82 = sbr.rel (0) target = $region29
    $region28: #{tpu_custom_call.1} parent=1 // pred_region
      _
    $region29: #{tpu_custom_call.1} parent=1 // pred_fallthru
      _
    // Predicated region
    $region30: #{tpu_custom_call.1} parent=1 // pred_check
      _
    $region31: #{tpu_custom_call.1} parent=1 // pred_check_branch
      %84 = sbr.rel (0) target = $region33
    $region32: #{tpu_custom_call.1} parent=1 // pred_region
      %s86 = ssub.s32 4096, 4096
      %87 = vsyncadd [#allocation14], %s86
      %s88 = sshll.u32 [#allocation13], 4
      %s89 = int_to_ptr.vmem [resolvable:$true] %s88
      %94 = dma.hbm_to_vmem [thread:$0]  %s7, 4096, %s89, [#allocation14], 128, 128, 8
    $region33: #{tpu_custom_call.1} parent=1 // pred_fallthru
      _
    // Predicated region
    $region34: #{tpu_custom_call.1} parent=1 // pred_check
      _
    $region35: #{tpu_custom_call.1} parent=1 // pred_check_branch
      %96 = sbr.rel (0) target = $region37
    $region36: #{tpu_custom_call.1} parent=1 // pred_region
      _
    $region37: #{tpu_custom_call.1} parent=1 // pred_fallthru
      _
    // Predicated region
    $region38: #{tpu_custom_call.1} parent=1 // pred_check
      _
    $region39: #{tpu_custom_call.1} parent=1 // pred_check_branch
      %98 = sbr.rel (0) target = $region41
    $region40: #{tpu_custom_call.1} parent=1 // pred_region
      %s100 = ssub.s32 2048, 2048
      %101 = vsyncadd [#allocation14], %s100
      %s102 = sshll.u32 [#allocation15], 4
      %s103 = int_to_ptr.vmem [resolvable:$true] %s102
      %108 = dma.hbm_to_vmem [thread:$0]  %s9, 2048, %s103, [#allocation14], 128, 128, 8
    $region41: #{tpu_custom_call.1} parent=1 // pred_fallthru
      _
    // Predicated region
    $region42: #{tpu_custom_call.1} parent=1 // pred_check
      _
    $region43: #{tpu_custom_call.1} parent=1 // pred_check_branch
      %110 = sbr.rel (0) target = $region45
    $region44: #{tpu_custom_call.1} parent=1 // pred_region
      _
    $region45: #{tpu_custom_call.1} parent=1 // pred_fallthru
      _
    // Predicated region
    $region46: #{tpu_custom_call.1} parent=1 // pred_check
      _
    $region47: #{tpu_custom_call.1} parent=1 // pred_check_branch
      %112 = sbr.rel (0) target = $region49
    $region48: #{tpu_custom_call.1} parent=1 // pred_region
      %113 = dma.done [#allocation5], 1024
    $region49: #{tpu_custom_call.1} parent=1 // pred_fallthru
      _
    // Predicated region
    $region50: #{tpu_custom_call.1} parent=1 // pred_check
      _
    $region51: #{tpu_custom_call.1} parent=1 // pred_check_branch
      %115 = sbr.rel (0) target = $region53
    $region52: #{tpu_custom_call.1} parent=1 // pred_region
      %116 = dma.done [#allocation8], 2048
    $region53: #{tpu_custom_call.1} parent=1 // pred_fallthru
      _
    // Predicated region
    $region54: #{tpu_custom_call.1} parent=1 // pred_check
      _
    $region55: #{tpu_custom_call.1} parent=1 // pred_check_branch
      %118 = sbr.rel (0) target = $region57
    $region56: #{tpu_custom_call.1} parent=1 // pred_region
      %119 = dma.done [#allocation8], 128
    $region57: #{tpu_custom_call.1} parent=1 // pred_fallthru
      _
    // Predicated region
    $region58: #{tpu_custom_call.1} parent=1 // pred_check
      _
    $region59: #{tpu_custom_call.1} parent=1 // pred_check_branch
      %121 = sbr.rel (0) target = $region61
    $region60: #{tpu_custom_call.1} parent=1 // pred_region
      %122 = dma.done [#allocation11], 4096
    $region61: #{tpu_custom_call.1} parent=1 // pred_fallthru
      _
    // Predicated region
    $region62: #{tpu_custom_call.1} parent=1 // pred_check
      _
    $region63: #{tpu_custom_call.1} parent=1 // pred_check_branch
      %124 = sbr.rel (0) target = $region65
    $region64: #{tpu_custom_call.1} parent=1 // pred_region
      %125 = dma.done [#allocation11], 4096
    $region65: #{tpu_custom_call.1} parent=1 // pred_fallthru
      _
    // Predicated region
    $region66: #{tpu_custom_call.1} parent=1 // pred_check
      _
    $region67: #{tpu_custom_call.1} parent=1 // pred_check_branch
      %127 = sbr.rel (0) target = $region69
    $region68: #{tpu_custom_call.1} parent=1 // pred_region
      %128 = dma.done [#allocation14], 4096
    $region69: #{tpu_custom_call.1} parent=1 // pred_fallthru
      _
    // Predicated region
    $region70: #{tpu_custom_call.1} parent=1 // pred_check
      _
    $region71: #{tpu_custom_call.1} parent=1 // pred_check_branch
      %130 = sbr.rel (0) target = $region73
    $region72: #{tpu_custom_call.1} parent=1 // pred_region
      %131 = dma.done [#allocation14], 2048
    $region73: #{tpu_custom_call.1} parent=1 // pred_fallthru
      _
    %v133 = vld [vmem:[#allocation4] sm:$0xf]
    %v134 = vld [vmem:[#allocation4 + $0x4] sm:$0xf]
    %v135 = vld [vmem:[#allocation4 + $0x8] sm:$0xf]
    %v136 = vld [vmem:[#allocation4 + $0xc] sm:$0xf]
    %v137 = vld [vmem:[#allocation4 + $0x10] sm:$0xf]
    %v138 = vld [vmem:[#allocation4 + $0x14] sm:$0xf]
    %v139 = vld [vmem:[#allocation4 + $0x18] sm:$0xf]
    %v140 = vld [vmem:[#allocation4 + $0x1c] sm:$0xf]
    %v141 = vld [vmem:[#allocation4 + $0x20] sm:$0xf]
    %v142 = vld [vmem:[#allocation4 + $0x24] sm:$0xf]
    %v143 = vld [vmem:[#allocation4 + $0x28] sm:$0xf]
    %v144 = vld [vmem:[#allocation4 + $0x2c] sm:$0xf]
    %v145 = vld [vmem:[#allocation4 + $0x30] sm:$0xf]
    %v146 = vld [vmem:[#allocation4 + $0x34] sm:$0xf]
    %v147 = vld [vmem:[#allocation4 + $0x38] sm:$0xf]
    %v148 = vld [vmem:[#allocation4 + $0x3c] sm:$0xf]
    %v149 = vld [vmem:[#allocation7] sm:$0xff]
    %v150 = vld [vmem:[#allocation7 + $0x8] sm:$0xff]
    %v151 = vld [vmem:[#allocation7 + $0x10] sm:$0xff]
    %v152 = vld [vmem:[#allocation7 + $0x18] sm:$0xff]
    %v153 = vld [vmem:[#allocation7 + $0x20] sm:$0xff]
    %v154 = vld [vmem:[#allocation7 + $0x28] sm:$0xff]
    %v155 = vld [vmem:[#allocation7 + $0x30] sm:$0xff]
    %v156 = vld [vmem:[#allocation7 + $0x38] sm:$0xff]
    %v157 = vld [vmem:[#allocation7 + $0x40] sm:$0xff]
    %v158 = vld [vmem:[#allocation7 + $0x48] sm:$0xff]
    %v159 = vld [vmem:[#allocation7 + $0x50] sm:$0xff]
    %v160 = vld [vmem:[#allocation7 + $0x58] sm:$0xff]
    %v161 = vld [vmem:[#allocation7 + $0x60] sm:$0xff]
    %v162 = vld [vmem:[#allocation7 + $0x68] sm:$0xff]
    %v163 = vld [vmem:[#allocation7 + $0x70] sm:$0xff]
    %v164 = vld [vmem:[#allocation7 + $0x78] sm:$0xff]
    %v165 = vpack.c.bf16 %v150, %v149
    %v166 = vpack.c.bf16 %v152, %v151
    %v167 = vpack.c.bf16 %v154, %v153
    %v168 = vpack.c.bf16 %v156, %v155
    %v169 = vpack.c.bf16 %v158, %v157
    %v170 = vpack.c.bf16 %v160, %v159
    %v171 = vpack.c.bf16 %v162, %v161
    %v172 = vpack.c.bf16 %v164, %v163
    %v189 = vunpack.c.l.b16 %v133
    %v190 = vunpack.c.l.b16 %v134
    %v191 = vunpack.c.l.b16 %v135
    %v192 = vunpack.c.l.b16 %v136
    %v193 = vunpack.c.l.b16 %v137
    %v194 = vunpack.c.l.b16 %v138
    %v195 = vunpack.c.l.b16 %v139
    %v196 = vunpack.c.l.b16 %v140
    %v197 = vunpack.c.l.b16 %v141
    %v198 = vunpack.c.l.b16 %v142
    %v199 = vunpack.c.l.b16 %v143
    %v200 = vunpack.c.l.b16 %v144
    %v201 = vunpack.c.l.b16 %v145
    %v202 = vunpack.c.l.b16 %v146
    %v203 = vunpack.c.l.b16 %v147
    %v204 = vunpack.c.l.b16 %v148
    %v205 = vpack.c.b16 %v190, %v189
    %v206 = vpack.c.b16 %v192, %v191
    %v207 = vpack.c.b16 %v194, %v193
    %v208 = vpack.c.b16 %v196, %v195
    %v209 = vpack.c.b16 %v198, %v197
    %v210 = vpack.c.b16 %v200, %v199
    %v211 = vpack.c.b16 %v202, %v201
    %v212 = vpack.c.b16 %v204, %v203
    %221 = vmatprep.subr.bf16.mxu0 0
    %222 = vmatpush1.bf16.msra.mxu0 %v165
    %223 = vmatprep.subr.bf16.mxu0 0
    %224 = vmatpush1.bf16.msra.mxu0 %v166
    %225 = vmatprep.subr.bf16.mxu0 0
    %226 = vmatpush1.bf16.msra.mxu0 %v167
    %227 = vmatprep.subr.bf16.mxu0 0
    %228 = vmatpush1.bf16.msra.mxu0 %v168
    %229 = vmatprep.subr.bf16.mxu0 0
    %230 = vmatpush1.bf16.msra.mxu0 %v169
    %231 = vmatprep.subr.bf16.mxu0 0
    %232 = vmatpush1.bf16.msra.mxu0 %v170
    %233 = vmatprep.subr.bf16.mxu0 0
    %234 = vmatpush1.bf16.msra.mxu0 %v171
    %235 = vmatprep.subr.bf16.mxu0 0
    %236 = vmatpush1.bf16.msra.mxu0 %v172
    %237 = vmatprep.subr.bf16.mxu0 0
    %238 = vmatpush1.bf16.msra.mxu0 0
    %239 = vmatprep.subr.bf16.mxu0 0
    %240 = vmatpush1.bf16.msra.mxu0 0
    %241 = vmatprep.subr.bf16.mxu0 0
    %242 = vmatpush1.bf16.msra.mxu0 0
    %243 = vmatprep.subr.bf16.mxu0 0
    %244 = vmatpush1.bf16.msra.mxu0 0
    %245 = vmatprep.subr.bf16.mxu0 0
    %246 = vmatpush1.bf16.msra.mxu0 0
    %247 = vmatprep.subr.bf16.mxu0 0
    %248 = vmatpush1.bf16.msra.mxu0 0
    %249 = vmatprep.subr.bf16.mxu0 0
    %250 = vmatpush1.bf16.msra.mxu0 0
    %251 = vmatprep.subr.bf16.mxu0 0
    %252 = vmatpush1.bf16.msra.mxu0 0
    %253 = vmatprep.mubr.bf16.mxu0 0
    %254 = vmatmul.mubr.bf16.gmra.mrb[0].mxu0 %v205
    %v255 = vpop.f32.mrb[0].mxu0
    %v256 = vadd.f32 0.0, %v255
    %v257 = vpop.f32.mrb[0].mxu0
    %v258 = vpop.f32.mrb[0].mxu0
    %v259 = vadd.f32 0.0, %v258
    %v260 = vpop.f32.mrb[0].mxu0
    %261 = vmatprep.mubr.bf16.mxu0 0
    %262 = vmatmul.mubr.bf16.gmra.mrb[0].mxu0 %v206
    %v263 = vpop.f32.mrb[0].mxu0
    %v264 = vadd.f32 0.0, %v263
    %v265 = vpop.f32.mrb[0].mxu0
    %v266 = vpop.f32.mrb[0].mxu0
    %v267 = vadd.f32 0.0, %v266
    %v268 = vpop.f32.mrb[0].mxu0
    %269 = vmatprep.mubr.bf16.mxu0 0
    %270 = vmatmul.mubr.bf16.gmra.mrb[0].mxu0 %v207
    %v271 = vpop.f32.mrb[0].mxu0
    %v272 = vadd.f32 0.0, %v271
    %v273 = vpop.f32.mrb[0].mxu0
    %v274 = vpop.f32.mrb[0].mxu0
    %v275 = vadd.f32 0.0, %v274
    %v276 = vpop.f32.mrb[0].mxu0
    %277 = vmatprep.mubr.bf16.mxu0 0
    %278 = vmatmul.mubr.bf16.gmra.mrb[0].mxu0 %v208
    %v279 = vpop.f32.mrb[0].mxu0
    %v280 = vadd.f32 0.0, %v279
    %v281 = vpop.f32.mrb[0].mxu0
    %v282 = vpop.f32.mrb[0].mxu0
    %v283 = vadd.f32 0.0, %v282
    %v284 = vpop.f32.mrb[0].mxu0
    %285 = vmatprep.mubr.bf16.mxu0 0
    %286 = vmatmul.mubr.bf16.gmra.mrb[0].mxu0 %v209
    %v287 = vpop.f32.mrb[0].mxu0
    %v288 = vadd.f32 0.0, %v287
    %v289 = vpop.f32.mrb[0].mxu0
    %v290 = vpop.f32.mrb[0].mxu0
    %v291 = vadd.f32 0.0, %v290
    %v292 = vpop.f32.mrb[0].mxu0
    %293 = vmatprep.mubr.bf16.mxu0 0
    %294 = vmatmul.mubr.bf16.gmra.mrb[0].mxu0 %v210
    %v295 = vpop.f32.mrb[0].mxu0
    %v296 = vadd.f32 0.0, %v295
    %v297 = vpop.f32.mrb[0].mxu0
    %v298 = vpop.f32.mrb[0].mxu0
    %v299 = vadd.f32 0.0, %v298
    %v300 = vpop.f32.mrb[0].mxu0
    %301 = vmatprep.mubr.bf16.mxu0 0
    %302 = vmatmul.mubr.bf16.gmra.mrb[0].mxu0 %v211
    %v303 = vpop.f32.mrb[0].mxu0
    %v304 = vadd.f32 0.0, %v303
    %v305 = vpop.f32.mrb[0].mxu0
    %v306 = vpop.f32.mrb[0].mxu0
    %v307 = vadd.f32 0.0, %v306
    %v308 = vpop.f32.mrb[0].mxu0
    %309 = vmatprep.mubr.bf16.mxu0 0
    %310 = vmatmul.mubr.bf16.gmra.mrb[0].mxu0 %v212
    %v311 = vpop.f32.mrb[0].mxu0
    %v312 = vadd.f32 0.0, %v311
    %v313 = vpop.f32.mrb[0].mxu0
    %v314 = vpop.f32.mrb[0].mxu0
    %v315 = vadd.f32 0.0, %v314
    %v316 = vpop.f32.mrb[0].mxu0
    %317 = vdwg.mxu0
    %318 = vst [vmem:[#allocation2] sm:$0xff] %v256
    %319 = vst [vmem:[#allocation2 + $0x10] sm:$0xff] %v259
    %320 = vst [vmem:[#allocation2 + $0x20] sm:$0xff] %v264
    %321 = vst [vmem:[#allocation2 + $0x30] sm:$0xff] %v267
    %322 = vst [vmem:[#allocation2 + $0x40] sm:$0xff] %v272
    %323 = vst [vmem:[#allocation2 + $0x50] sm:$0xff] %v275
    %324 = vst [vmem:[#allocation2 + $0x60] sm:$0xff] %v280
    %325 = vst [vmem:[#allocation2 + $0x70] sm:$0xff] %v283
    %326 = vst [vmem:[#allocation2 + $0x80] sm:$0xff] %v288
    %327 = vst [vmem:[#allocation2 + $0x90] sm:$0xff] %v291
    %328 = vst [vmem:[#allocation2 + $0xa0] sm:$0xff] %v296
    %329 = vst [vmem:[#allocation2 + $0xb0] sm:$0xff] %v299
    %330 = vst [vmem:[#allocation2 + $0xc0] sm:$0xff] %v304
    %331 = vst [vmem:[#allocation2 + $0xd0] sm:$0xff] %v307
    %332 = vst [vmem:[#allocation2 + $0xe0] sm:$0xff] %v312
    %333 = vst [vmem:[#allocation2 + $0xf0] sm:$0xff] %v315
    %334 = vst [vmem:[#allocation2 + $0x8] sm:$0xff] %v149
    %335 = vst [vmem:[#allocation2 + $0x18] sm:$0xff] %v150
    %336 = vst [vmem:[#allocation2 + $0x28] sm:$0xff] %v151
    %337 = vst [vmem:[#allocation2 + $0x38] sm:$0xff] %v152
    %338 = vst [vmem:[#allocation2 + $0x48] sm:$0xff] %v153
    %339 = vst [vmem:[#allocation2 + $0x58] sm:$0xff] %v154
    %340 = vst [vmem:[#allocation2 + $0x68] sm:$0xff] %v155
    %341 = vst [vmem:[#allocation2 + $0x78] sm:$0xff] %v156
    %342 = vst [vmem:[#allocation2 + $0x88] sm:$0xff] %v157
    %343 = vst [vmem:[#allocation2 + $0x98] sm:$0xff] %v158
    %344 = vst [vmem:[#allocation2 + $0xa8] sm:$0xff] %v159
    %345 = vst [vmem:[#allocation2 + $0xb8] sm:$0xff] %v160
    %346 = vst [vmem:[#allocation2 + $0xc8] sm:$0xff] %v161
    %347 = vst [vmem:[#allocation2 + $0xd8] sm:$0xff] %v162
    %348 = vst [vmem:[#allocation2 + $0xe8] sm:$0xff] %v163
    %349 = vst [vmem:[#allocation2 + $0xf8] sm:$0xff] %v164
    %v350 = vld [vmem:[#allocation2] sm:$0xff]
    %v351 = vld [vmem:[#allocation2 + $0x8] sm:$0xff]
    %v352 = vld [vmem:[#allocation2 + $0x10] sm:$0xff]
    %v353 = vld [vmem:[#allocation2 + $0x18] sm:$0xff]
    %v354 = vld [vmem:[#allocation2 + $0x20] sm:$0xff]
    %v355 = vld [vmem:[#allocation2 + $0x28] sm:$0xff]
    %v356 = vld [vmem:[#allocation2 + $0x30] sm:$0xff]
    %v357 = vld [vmem:[#allocation2 + $0x38] sm:$0xff]
    %v358 = vld [vmem:[#allocation2 + $0x40] sm:$0xff]
    %v359 = vld [vmem:[#allocation2 + $0x48] sm:$0xff]
    %v360 = vld [vmem:[#allocation2 + $0x50] sm:$0xff]
    %v361 = vld [vmem:[#allocation2 + $0x58] sm:$0xff]
    %v362 = vld [vmem:[#allocation2 + $0x60] sm:$0xff]
    %v363 = vld [vmem:[#allocation2 + $0x68] sm:$0xff]
    %v364 = vld [vmem:[#allocation2 + $0x70] sm:$0xff]
    %v365 = vld [vmem:[#allocation2 + $0x78] sm:$0xff]
    %v366 = vld [vmem:[#allocation2 + $0x80] sm:$0xff]
    %v367 = vld [vmem:[#allocation2 + $0x88] sm:$0xff]
    %v368 = vld [vmem:[#allocation2 + $0x90] sm:$0xff]
    %v369 = vld [vmem:[#allocation2 + $0x98] sm:$0xff]
    %v370 = vld [vmem:[#allocation2 + $0xa0] sm:$0xff]
    %v371 = vld [vmem:[#allocation2 + $0xa8] sm:$0xff]
    %v372 = vld [vmem:[#allocation2 + $0xb0] sm:$0xff]
    %v373 = vld [vmem:[#allocation2 + $0xb8] sm:$0xff]
    %v374 = vld [vmem:[#allocation2 + $0xc0] sm:$0xff]
    %v375 = vld [vmem:[#allocation2 + $0xc8] sm:$0xff]
    %v376 = vld [vmem:[#allocation2 + $0xd0] sm:$0xff]
    %v377 = vld [vmem:[#allocation2 + $0xd8] sm:$0xff]
    %v378 = vld [vmem:[#allocation2 + $0xe0] sm:$0xff]
    %v379 = vld [vmem:[#allocation2 + $0xe8] sm:$0xff]
    %v380 = vld [vmem:[#allocation2 + $0xf0] sm:$0xff]
    %v381 = vld [vmem:[#allocation2 + $0xf8] sm:$0xff]
    %v382 = vld [vmem:[#allocation10] sm:$0xff]
    %v383 = vld [vmem:[#allocation10 + $0x8] sm:$0xff]
    %v384 = vld [vmem:[#allocation10 + $0x10] sm:$0xff]
    %v385 = vld [vmem:[#allocation10 + $0x18] sm:$0xff]
    %v386 = vld [vmem:[#allocation10 + $0x20] sm:$0xff]
    %v387 = vld [vmem:[#allocation10 + $0x28] sm:$0xff]
    %v388 = vld [vmem:[#allocation10 + $0x30] sm:$0xff]
    %v389 = vld [vmem:[#allocation10 + $0x38] sm:$0xff]
    %v390 = vld [vmem:[#allocation10 + $0x40] sm:$0xff]
    %v391 = vld [vmem:[#allocation10 + $0x48] sm:$0xff]
    %v392 = vld [vmem:[#allocation10 + $0x50] sm:$0xff]
    %v393 = vld [vmem:[#allocation10 + $0x58] sm:$0xff]
    %v394 = vld [vmem:[#allocation10 + $0x60] sm:$0xff]
    %v395 = vld [vmem:[#allocation10 + $0x68] sm:$0xff]
    %v396 = vld [vmem:[#allocation10 + $0x70] sm:$0xff]
    %v397 = vld [vmem:[#allocation10 + $0x78] sm:$0xff]
    %v398 = vld [vmem:[#allocation10 + $0x80] sm:$0xff]
    %v399 = vld [vmem:[#allocation10 + $0x88] sm:$0xff]
    %v400 = vld [vmem:[#allocation10 + $0x90] sm:$0xff]
    %v401 = vld [vmem:[#allocation10 + $0x98] sm:$0xff]
    %v402 = vld [vmem:[#allocation10 + $0xa0] sm:$0xff]
    %v403 = vld [vmem:[#allocation10 + $0xa8] sm:$0xff]
    %v404 = vld [vmem:[#allocation10 + $0xb0] sm:$0xff]
    %v405 = vld [vmem:[#allocation10 + $0xb8] sm:$0xff]
    %v406 = vld [vmem:[#allocation10 + $0xc0] sm:$0xff]
    %v407 = vld [vmem:[#allocation10 + $0xc8] sm:$0xff]
    %v408 = vld [vmem:[#allocation10 + $0xd0] sm:$0xff]
    %v409 = vld [vmem:[#allocation10 + $0xd8] sm:$0xff]
    %v410 = vld [vmem:[#allocation10 + $0xe0] sm:$0xff]
    %v411 = vld [vmem:[#allocation10 + $0xe8] sm:$0xff]
    %v412 = vld [vmem:[#allocation10 + $0xf0] sm:$0xff]
    %v413 = vld [vmem:[#allocation10 + $0xf8] sm:$0xff]
    %v414 = vld [vmem:[%s4] sm:$0x1]
    %v416 = vlaneseq
    %v417 = vshrl.u32 %v416, 7
    %v418 = vsub.s32 0, %v417
    %v419 = vrot.slane %v414, %v418
    %421 = vmatprep.subr.mxu0 0.0
    %422 = vmatpush1.msra.mxu0 %v382
    %423 = vmatprep.subr.mxu0 0.0
    %424 = vmatpush1.msra.mxu0 %v383
    %425 = vmatprep.subr.mxu0 0.0
    %426 = vmatpush1.msra.mxu0 %v384
    %427 = vmatprep.subr.mxu0 0.0
    %428 = vmatpush1.msra.mxu0 %v385
    %429 = vmatprep.subr.mxu0 0.0
    %430 = vmatpush1.msra.mxu0 %v386
    %431 = vmatprep.subr.mxu0 0.0
    %432 = vmatpush1.msra.mxu0 %v387
    %433 = vmatprep.subr.mxu0 0.0
    %434 = vmatpush1.msra.mxu0 %v388
    %435 = vmatprep.subr.mxu0 0.0
    %436 = vmatpush1.msra.mxu0 %v389
    %437 = vmatprep.subr.mxu0 0.0
    %438 = vmatpush1.msra.mxu0 %v390
    %439 = vmatprep.subr.mxu0 0.0
    %440 = vmatpush1.msra.mxu0 %v391
    %441 = vmatprep.subr.mxu0 0.0
    %442 = vmatpush1.msra.mxu0 %v392
    %443 = vmatprep.subr.mxu0 0.0
    %444 = vmatpush1.msra.mxu0 %v393
    %445 = vmatprep.subr.mxu0 0.0
    %446 = vmatpush1.msra.mxu0 %v394
    %447 = vmatprep.subr.mxu0 0.0
    %448 = vmatpush1.msra.mxu0 %v395
    %449 = vmatprep.subr.mxu0 0.0
    %450 = vmatpush1.msra.mxu0 %v396
    %451 = vmatprep.subr.mxu0 0.0
    %452 = vmatpush1.msra.mxu0 %v397
    %453 = vmatprep.subr.mxu0 0.0
    %454 = vmatpush1.msra.mxu0 %v398
    %455 = vmatprep.subr.mxu0 0.0
    %456 = vmatpush1.msra.mxu0 %v399
    %457 = vmatprep.subr.mxu0 0.0
    %458 = vmatpush1.msra.mxu0 %v400
    %459 = vmatprep.subr.mxu0 0.0
    %460 = vmatpush1.msra.mxu0 %v401
    %461 = vmatprep.subr.mxu0 0.0
    %462 = vmatpush1.msra.mxu0 %v402
    %463 = vmatprep.subr.mxu0 0.0
    %464 = vmatpush1.msra.mxu0 %v403
    %465 = vmatprep.subr.mxu0 0.0
    %466 = vmatpush1.msra.mxu0 %v404
    %467 = vmatprep.subr.mxu0 0.0
    %468 = vmatpush1.msra.mxu0 %v405
    %469 = vmatprep.subr.mxu0 0.0
    %470 = vmatpush1.msra.mxu0 %v406
    %471 = vmatprep.subr.mxu0 0.0
    %472 = vmatpush1.msra.mxu0 %v407
    %473 = vmatprep.subr.mxu0 0.0
    %474 = vmatpush1.msra.mxu0 %v408
    %475 = vmatprep.subr.mxu0 0.0
    %476 = vmatpush1.msra.mxu0 %v409
    %477 = vmatprep.subr.mxu0 0.0
    %478 = vmatpush1.msra.mxu0 %v410
    %479 = vmatprep.subr.mxu0 0.0
    %480 = vmatpush1.msra.mxu0 %v411
    %481 = vmatprep.subr.mxu0 0.0
    %482 = vmatpush1.msra.mxu0 %v412
    %483 = vmatprep.subr.mxu0 0.0
    %484 = vmatpush1.msra.mxu0 %v413
    %485 = vmatprep.mubr.f32.mxu0 %v351
    %486 = vmatmul.mubr.f32.gmra.mrb[0].mxu0 %v350
    %v487 = vpop.f32.mrb[0].mxu0
    %v488 = vadd.f32 %v419, %v487
    %v489 = vpop.f32.mrb[0].mxu0
    %490 = vmatprep.mubr.f32.mxu0 %v353
    %491 = vmatmul.mubr.f32.gmra.mrb[0].mxu0 %v352
    %v492 = vpop.f32.mrb[0].mxu0
    %v493 = vadd.f32 %v419, %v492
    %v494 = vpop.f32.mrb[0].mxu0
    %495 = vmatprep.mubr.f32.mxu0 %v355
    %496 = vmatmul.mubr.f32.gmra.mrb[0].mxu0 %v354
    %v497 = vpop.f32.mrb[0].mxu0
    %v498 = vadd.f32 %v419, %v497
    %v499 = vpop.f32.mrb[0].mxu0
    %500 = vmatprep.mubr.f32.mxu0 %v357
    %501 = vmatmul.mubr.f32.gmra.mrb[0].mxu0 %v356
    %v502 = vpop.f32.mrb[0].mxu0
    %v503 = vadd.f32 %v419, %v502
    %v504 = vpop.f32.mrb[0].mxu0
    %505 = vmatprep.mubr.f32.mxu0 %v359
    %506 = vmatmul.mubr.f32.gmra.mrb[0].mxu0 %v358
    %v507 = vpop.f32.mrb[0].mxu0
    %v508 = vadd.f32 %v419, %v507
    %v509 = vpop.f32.mrb[0].mxu0
    %510 = vmatprep.mubr.f32.mxu0 %v361
    %511 = vmatmul.mubr.f32.gmra.mrb[0].mxu0 %v360
    %v512 = vpop.f32.mrb[0].mxu0
    %v513 = vadd.f32 %v419, %v512
    %v514 = vpop.f32.mrb[0].mxu0
    %515 = vmatprep.mubr.f32.mxu0 %v363
    %516 = vmatmul.mubr.f32.gmra.mrb[0].mxu0 %v362
    %v517 = vpop.f32.mrb[0].mxu0
    %v518 = vadd.f32 %v419, %v517
    %v519 = vpop.f32.mrb[0].mxu0
    %520 = vmatprep.mubr.f32.mxu0 %v365
    %521 = vmatmul.mubr.f32.gmra.mrb[0].mxu0 %v364
    %v522 = vpop.f32.mrb[0].mxu0
    %v523 = vadd.f32 %v419, %v522
    %v524 = vpop.f32.mrb[0].mxu0
    %525 = vmatprep.mubr.f32.mxu0 %v367
    %526 = vmatmul.mubr.f32.gmra.mrb[0].mxu0 %v366
    %v527 = vpop.f32.mrb[0].mxu0
    %v528 = vadd.f32 %v419, %v527
    %v529 = vpop.f32.mrb[0].mxu0
    %530 = vmatprep.mubr.f32.mxu0 %v369
    %531 = vmatmul.mubr.f32.gmra.mrb[0].mxu0 %v368
    %v532 = vpop.f32.mrb[0].mxu0
    %v533 = vadd.f32 %v419, %v532
    %v534 = vpop.f32.mrb[0].mxu0
    %535 = vmatprep.mubr.f32.mxu0 %v371
    %536 = vmatmul.mubr.f32.gmra.mrb[0].mxu0 %v370
    %v537 = vpop.f32.mrb[0].mxu0
    %v538 = vadd.f32 %v419, %v537
    %v539 = vpop.f32.mrb[0].mxu0
    %540 = vmatprep.mubr.f32.mxu0 %v373
    %541 = vmatmul.mubr.f32.gmra.mrb[0].mxu0 %v372
    %v542 = vpop.f32.mrb[0].mxu0
    %v543 = vadd.f32 %v419, %v542
    %v544 = vpop.f32.mrb[0].mxu0
    %545 = vmatprep.mubr.f32.mxu0 %v375
    %546 = vmatmul.mubr.f32.gmra.mrb[0].mxu0 %v374
    %v547 = vpop.f32.mrb[0].mxu0
    %v548 = vadd.f32 %v419, %v547
    %v549 = vpop.f32.mrb[0].mxu0
    %550 = vmatprep.mubr.f32.mxu0 %v377
    %551 = vmatmul.mubr.f32.gmra.mrb[0].mxu0 %v376
    %v552 = vpop.f32.mrb[0].mxu0
    %v553 = vadd.f32 %v419, %v552
    %v554 = vpop.f32.mrb[0].mxu0
    %555 = vmatprep.mubr.f32.mxu0 %v379
    %556 = vmatmul.mubr.f32.gmra.mrb[0].mxu0 %v378
    %v557 = vpop.f32.mrb[0].mxu0
    %v558 = vadd.f32 %v419, %v557
    %v559 = vpop.f32.mrb[0].mxu0
    %560 = vmatprep.mubr.f32.mxu0 %v381
    %561 = vmatmul.mubr.f32.gmra.mrb[0].mxu0 %v380
    %v562 = vpop.f32.mrb[0].mxu0
    %v563 = vadd.f32 %v419, %v562
    %v564 = vpop.f32.mrb[0].mxu0
    %565 = vdwg.mxu0
    %566 = vst [vmem:[#allocation3] sm:$0xff] %v488
    %567 = vst [vmem:[#allocation3 + $0x10] sm:$0xff] %v493
    %568 = vst [vmem:[#allocation3 + $0x20] sm:$0xff] %v498
    %569 = vst [vmem:[#allocation3 + $0x30] sm:$0xff] %v503
    %570 = vst [vmem:[#allocation3 + $0x40] sm:$0xff] %v508
    %571 = vst [vmem:[#allocation3 + $0x50] sm:$0xff] %v513
    %572 = vst [vmem:[#allocation3 + $0x60] sm:$0xff] %v518
    %573 = vst [vmem:[#allocation3 + $0x70] sm:$0xff] %v523
    %574 = vst [vmem:[#allocation3 + $0x80] sm:$0xff] %v528
    %575 = vst [vmem:[#allocation3 + $0x90] sm:$0xff] %v533
    %576 = vst [vmem:[#allocation3 + $0xa0] sm:$0xff] %v538
    %577 = vst [vmem:[#allocation3 + $0xb0] sm:$0xff] %v543
    %578 = vst [vmem:[#allocation3 + $0xc0] sm:$0xff] %v548
    %579 = vst [vmem:[#allocation3 + $0xd0] sm:$0xff] %v553
    %580 = vst [vmem:[#allocation3 + $0xe0] sm:$0xff] %v558
    %581 = vst [vmem:[#allocation3 + $0xf0] sm:$0xff] %v563
    %v582 = vpack.c.bf16 %v493, %v488
    %v583 = vpack.c.bf16 %v503, %v498
    %v584 = vpack.c.bf16 %v513, %v508
    %v585 = vpack.c.bf16 %v523, %v518
    %v586 = vpack.c.bf16 %v533, %v528
    %v587 = vpack.c.bf16 %v543, %v538
    %v588 = vpack.c.bf16 %v553, %v548
    %v589 = vpack.c.bf16 %v563, %v558
    %590 = vmatprep.subr.bf16.mxu0 0
    %591 = vmatpush1.bf16.msra.mxu0 %v582
    %592 = vmatprep.subr.bf16.mxu0 0
    %593 = vmatpush1.bf16.msra.mxu0 %v583
    %594 = vmatprep.subr.bf16.mxu0 0
    %595 = vmatpush1.bf16.msra.mxu0 %v584
    %596 = vmatprep.subr.bf16.mxu0 0
    %597 = vmatpush1.bf16.msra.mxu0 %v585
    %598 = vmatprep.subr.bf16.mxu0 0
    %599 = vmatpush1.bf16.msra.mxu0 %v586
    %600 = vmatprep.subr.bf16.mxu0 0
    %601 = vmatpush1.bf16.msra.mxu0 %v587
    %602 = vmatprep.subr.bf16.mxu0 0
    %603 = vmatpush1.bf16.msra.mxu0 %v588
    %604 = vmatprep.subr.bf16.mxu0 0
    %605 = vmatpush1.bf16.msra.mxu0 %v589
    %606 = vmatprep.subr.bf16.mxu0 0
    %607 = vmatpush1.bf16.msra.mxu0 0
    %608 = vmatprep.subr.bf16.mxu0 0
    %609 = vmatpush1.bf16.msra.mxu0 0
    %610 = vmatprep.subr.bf16.mxu0 0
    %611 = vmatpush1.bf16.msra.mxu0 0
    %612 = vmatprep.subr.bf16.mxu0 0
    %613 = vmatpush1.bf16.msra.mxu0 0
    %614 = vmatprep.subr.bf16.mxu0 0
    %615 = vmatpush1.bf16.msra.mxu0 0
    %616 = vmatprep.subr.bf16.mxu0 0
    %617 = vmatpush1.bf16.msra.mxu0 0
    %618 = vmatprep.subr.bf16.mxu0 0
    %619 = vmatpush1.bf16.msra.mxu0 0
    %620 = vmatprep.subr.bf16.mxu0 0
    %621 = vmatpush1.bf16.msra.mxu0 0
    %622 = vmatprep.mubr.bf16.mxu0 0
    %623 = vmatmul.mubr.bf16.gmra.mrb[0].mxu0 %v205
    %v624 = vpop.f32.mrb[0].mxu0
    %v625 = vadd.f32 0.0, %v624
    %v626 = vpop.f32.mrb[0].mxu0
    %v627 = vpop.f32.mrb[0].mxu0
    %v628 = vadd.f32 0.0, %v627
    %v629 = vpop.f32.mrb[0].mxu0
    %630 = vmatprep.mubr.bf16.mxu0 0
    %631 = vmatmul.mubr.bf16.gmra.mrb[0].mxu0 %v206
    %v632 = vpop.f32.mrb[0].mxu0
    %v633 = vadd.f32 0.0, %v632
    %v634 = vpop.f32.mrb[0].mxu0
    %v635 = vpop.f32.mrb[0].mxu0
    %v636 = vadd.f32 0.0, %v635
    %v637 = vpop.f32.mrb[0].mxu0
    %638 = vmatprep.mubr.bf16.mxu0 0
    %639 = vmatmul.mubr.bf16.gmra.mrb[0].mxu0 %v207
    %v640 = vpop.f32.mrb[0].mxu0
    %v641 = vadd.f32 0.0, %v640
    %v642 = vpop.f32.mrb[0].mxu0
    %v643 = vpop.f32.mrb[0].mxu0
    %v644 = vadd.f32 0.0, %v643
    %v645 = vpop.f32.mrb[0].mxu0
    %646 = vmatprep.mubr.bf16.mxu0 0
    %647 = vmatmul.mubr.bf16.gmra.mrb[0].mxu0 %v208
    %v648 = vpop.f32.mrb[0].mxu0
    %v649 = vadd.f32 0.0, %v648
    %v650 = vpop.f32.mrb[0].mxu0
    %v651 = vpop.f32.mrb[0].mxu0
    %v652 = vadd.f32 0.0, %v651
    %v653 = vpop.f32.mrb[0].mxu0
    %654 = vmatprep.mubr.bf16.mxu0 0
    %655 = vmatmul.mubr.bf16.gmra.mrb[0].mxu0 %v209
    %v656 = vpop.f32.mrb[0].mxu0
    %v657 = vadd.f32 0.0, %v656
    %v658 = vpop.f32.mrb[0].mxu0
    %v659 = vpop.f32.mrb[0].mxu0
    %v660 = vadd.f32 0.0, %v659
    %v661 = vpop.f32.mrb[0].mxu0
    %662 = vmatprep.mubr.bf16.mxu0 0
    %663 = vmatmul.mubr.bf16.gmra.mrb[0].mxu0 %v210
    %v664 = vpop.f32.mrb[0].mxu0
    %v665 = vadd.f32 0.0, %v664
    %v666 = vpop.f32.mrb[0].mxu0
    %v667 = vpop.f32.mrb[0].mxu0
    %v668 = vadd.f32 0.0, %v667
    %v669 = vpop.f32.mrb[0].mxu0
    %670 = vmatprep.mubr.bf16.mxu0 0
    %671 = vmatmul.mubr.bf16.gmra.mrb[0].mxu0 %v211
    %v672 = vpop.f32.mrb[0].mxu0
    %v673 = vadd.f32 0.0, %v672
    %v674 = vpop.f32.mrb[0].mxu0
    %v675 = vpop.f32.mrb[0].mxu0
    %v676 = vadd.f32 0.0, %v675
    %v677 = vpop.f32.mrb[0].mxu0
    %678 = vmatprep.mubr.bf16.mxu0 0
    %679 = vmatmul.mubr.bf16.gmra.mrb[0].mxu0 %v212
    %v680 = vpop.f32.mrb[0].mxu0
    %v681 = vadd.f32 0.0, %v680
    %v682 = vpop.f32.mrb[0].mxu0
    %v683 = vpop.f32.mrb[0].mxu0
    %v684 = vadd.f32 0.0, %v683
    %v685 = vpop.f32.mrb[0].mxu0
    %686 = vdwg.mxu0
    %687 = vst [vmem:[#allocation2] sm:$0xff] %v625
    %688 = vst [vmem:[#allocation2 + $0x10] sm:$0xff] %v628
    %689 = vst [vmem:[#allocation2 + $0x20] sm:$0xff] %v633
    %690 = vst [vmem:[#allocation2 + $0x30] sm:$0xff] %v636
    %691 = vst [vmem:[#allocation2 + $0x40] sm:$0xff] %v641
    %692 = vst [vmem:[#allocation2 + $0x50] sm:$0xff] %v644
    %693 = vst [vmem:[#allocation2 + $0x60] sm:$0xff] %v649
    %694 = vst [vmem:[#allocation2 + $0x70] sm:$0xff] %v652
    %695 = vst [vmem:[#allocation2 + $0x80] sm:$0xff] %v657
    %696 = vst [vmem:[#allocation2 + $0x90] sm:$0xff] %v660
    %697 = vst [vmem:[#allocation2 + $0xa0] sm:$0xff] %v665
    %698 = vst [vmem:[#allocation2 + $0xb0] sm:$0xff] %v668
    %699 = vst [vmem:[#allocation2 + $0xc0] sm:$0xff] %v673
    %700 = vst [vmem:[#allocation2 + $0xd0] sm:$0xff] %v676
    %701 = vst [vmem:[#allocation2 + $0xe0] sm:$0xff] %v681
    %702 = vst [vmem:[#allocation2 + $0xf0] sm:$0xff] %v684
    %703 = vst [vmem:[#allocation2 + $0x8] sm:$0xff] %v488
    %704 = vst [vmem:[#allocation2 + $0x18] sm:$0xff] %v493
    %705 = vst [vmem:[#allocation2 + $0x28] sm:$0xff] %v498
    %706 = vst [vmem:[#allocation2 + $0x38] sm:$0xff] %v503
    %707 = vst [vmem:[#allocation2 + $0x48] sm:$0xff] %v508
    %708 = vst [vmem:[#allocation2 + $0x58] sm:$0xff] %v513
    %709 = vst [vmem:[#allocation2 + $0x68] sm:$0xff] %v518
    %710 = vst [vmem:[#allocation2 + $0x78] sm:$0xff] %v523
    %711 = vst [vmem:[#allocation2 + $0x88] sm:$0xff] %v528
    %712 = vst [vmem:[#allocation2 + $0x98] sm:$0xff] %v533
    %713 = vst [vmem:[#allocation2 + $0xa8] sm:$0xff] %v538
    %714 = vst [vmem:[#allocation2 + $0xb8] sm:$0xff] %v543
    %715 = vst [vmem:[#allocation2 + $0xc8] sm:$0xff] %v548
    %716 = vst [vmem:[#allocation2 + $0xd8] sm:$0xff] %v553
    %717 = vst [vmem:[#allocation2 + $0xe8] sm:$0xff] %v558
    %718 = vst [vmem:[#allocation2 + $0xf8] sm:$0xff] %v563
    %v719 = vld [vmem:[#allocation2] sm:$0xff]
    %v720 = vld [vmem:[#allocation2 + $0x8] sm:$0xff]
    %v721 = vld [vmem:[#allocation2 + $0x10] sm:$0xff]
    %v722 = vld [vmem:[#allocation2 + $0x18] sm:$0xff]
    %v723 = vld [vmem:[#allocation2 + $0x20] sm:$0xff]
    %v724 = vld [vmem:[#allocation2 + $0x28] sm:$0xff]
    %v725 = vld [vmem:[#allocation2 + $0x30] sm:$0xff]
    %v726 = vld [vmem:[#allocation2 + $0x38] sm:$0xff]
    %v727 = vld [vmem:[#allocation2 + $0x40] sm:$0xff]
    %v728 = vld [vmem:[#allocation2 + $0x48] sm:$0xff]
    %v729 = vld [vmem:[#allocation2 + $0x50] sm:$0xff]
    %v730 = vld [vmem:[#allocation2 + $0x58] sm:$0xff]
    %v731 = vld [vmem:[#allocation2 + $0x60] sm:$0xff]
    %v732 = vld [vmem:[#allocation2 + $0x68] sm:$0xff]
    %v733 = vld [vmem:[#allocation2 + $0x70] sm:$0xff]
    %v734 = vld [vmem:[#allocation2 + $0x78] sm:$0xff]
    %v735 = vld [vmem:[#allocation2 + $0x80] sm:$0xff]
    %v736 = vld [vmem:[#allocation2 + $0x88] sm:$0xff]
    %v737 = vld [vmem:[#allocation2 + $0x90] sm:$0xff]
    %v738 = vld [vmem:[#allocation2 + $0x98] sm:$0xff]
    %v739 = vld [vmem:[#allocation2 + $0xa0] sm:$0xff]
    %v740 = vld [vmem:[#allocation2 + $0xa8] sm:$0xff]
    %v741 = vld [vmem:[#allocation2 + $0xb0] sm:$0xff]
    %v742 = vld [vmem:[#allocation2 + $0xb8] sm:$0xff]
    %v743 = vld [vmem:[#allocation2 + $0xc0] sm:$0xff]
    %v744 = vld [vmem:[#allocation2 + $0xc8] sm:$0xff]
    %v745 = vld [vmem:[#allocation2 + $0xd0] sm:$0xff]
    %v746 = vld [vmem:[#allocation2 + $0xd8] sm:$0xff]
    %v747 = vld [vmem:[#allocation2 + $0xe0] sm:$0xff]
    %v748 = vld [vmem:[#allocation2 + $0xe8] sm:$0xff]
    %v749 = vld [vmem:[#allocation2 + $0xf0] sm:$0xff]
    %v750 = vld [vmem:[#allocation2 + $0xf8] sm:$0xff]
    %v751 = vld [vmem:[#allocation12] sm:$0xff]
    %v752 = vld [vmem:[#allocation12 + $0x8] sm:$0xff]
    %v753 = vld [vmem:[#allocation12 + $0x10] sm:$0xff]
    %v754 = vld [vmem:[#allocation12 + $0x18] sm:$0xff]
    %v755 = vld [vmem:[#allocation12 + $0x20] sm:$0xff]
    %v756 = vld [vmem:[#allocation12 + $0x28] sm:$0xff]
    %v757 = vld [vmem:[#allocation12 + $0x30] sm:$0xff]
    %v758 = vld [vmem:[#allocation12 + $0x38] sm:$0xff]
    %v759 = vld [vmem:[#allocation12 + $0x40] sm:$0xff]
    %v760 = vld [vmem:[#allocation12 + $0x48] sm:$0xff]
    %v761 = vld [vmem:[#allocation12 + $0x50] sm:$0xff]
    %v762 = vld [vmem:[#allocation12 + $0x58] sm:$0xff]
    %v763 = vld [vmem:[#allocation12 + $0x60] sm:$0xff]
    %v764 = vld [vmem:[#allocation12 + $0x68] sm:$0xff]
    %v765 = vld [vmem:[#allocation12 + $0x70] sm:$0xff]
    %v766 = vld [vmem:[#allocation12 + $0x78] sm:$0xff]
    %v767 = vld [vmem:[#allocation12 + $0x80] sm:$0xff]
    %v768 = vld [vmem:[#allocation12 + $0x88] sm:$0xff]
    %v769 = vld [vmem:[#allocation12 + $0x90] sm:$0xff]
    %v770 = vld [vmem:[#allocation12 + $0x98] sm:$0xff]
    %v771 = vld [vmem:[#allocation12 + $0xa0] sm:$0xff]
    %v772 = vld [vmem:[#allocation12 + $0xa8] sm:$0xff]
    %v773 = vld [vmem:[#allocation12 + $0xb0] sm:$0xff]
    %v774 = vld [vmem:[#allocation12 + $0xb8] sm:$0xff]
    %v775 = vld [vmem:[#allocation12 + $0xc0] sm:$0xff]
    %v776 = vld [vmem:[#allocation12 + $0xc8] sm:$0xff]
    %v777 = vld [vmem:[#allocation12 + $0xd0] sm:$0xff]
    %v778 = vld [vmem:[#allocation12 + $0xd8] sm:$0xff]
    %v779 = vld [vmem:[#allocation12 + $0xe0] sm:$0xff]
    %v780 = vld [vmem:[#allocation12 + $0xe8] sm:$0xff]
    %v781 = vld [vmem:[#allocation12 + $0xf0] sm:$0xff]
    %v782 = vld [vmem:[#allocation12 + $0xf8] sm:$0xff]
    %v783 = vld [vmem:[%s6] sm:$0x1]
    %v785 = vlaneseq
    %v786 = vshrl.u32 %v785, 7
    %v787 = vsub.s32 0, %v786
    %v788 = vrot.slane %v783, %v787
    %790 = vmatprep.subr.mxu0 0.0
    %791 = vmatpush1.msra.mxu0 %v751
    %792 = vmatprep.subr.mxu0 0.0
    %793 = vmatpush1.msra.mxu0 %v752
    %794 = vmatprep.subr.mxu0 0.0
    %795 = vmatpush1.msra.mxu0 %v753
    %796 = vmatprep.subr.mxu0 0.0
    %797 = vmatpush1.msra.mxu0 %v754
    %798 = vmatprep.subr.mxu0 0.0
    %799 = vmatpush1.msra.mxu0 %v755
    %800 = vmatprep.subr.mxu0 0.0
    %801 = vmatpush1.msra.mxu0 %v756
    %802 = vmatprep.subr.mxu0 0.0
    %803 = vmatpush1.msra.mxu0 %v757
    %804 = vmatprep.subr.mxu0 0.0
    %805 = vmatpush1.msra.mxu0 %v758
    %806 = vmatprep.subr.mxu0 0.0
    %807 = vmatpush1.msra.mxu0 %v759
    %808 = vmatprep.subr.mxu0 0.0
    %809 = vmatpush1.msra.mxu0 %v760
    %810 = vmatprep.subr.mxu0 0.0
    %811 = vmatpush1.msra.mxu0 %v761
    %812 = vmatprep.subr.mxu0 0.0
    %813 = vmatpush1.msra.mxu0 %v762
    %814 = vmatprep.subr.mxu0 0.0
    %815 = vmatpush1.msra.mxu0 %v763
    %816 = vmatprep.subr.mxu0 0.0
    %817 = vmatpush1.msra.mxu0 %v764
    %818 = vmatprep.subr.mxu0 0.0
    %819 = vmatpush1.msra.mxu0 %v765
    %820 = vmatprep.subr.mxu0 0.0
    %821 = vmatpush1.msra.mxu0 %v766
    %822 = vmatprep.subr.mxu0 0.0
    %823 = vmatpush1.msra.mxu0 %v767
    %824 = vmatprep.subr.mxu0 0.0
    %825 = vmatpush1.msra.mxu0 %v768
    %826 = vmatprep.subr.mxu0 0.0
    %827 = vmatpush1.msra.mxu0 %v769
    %828 = vmatprep.subr.mxu0 0.0
    %829 = vmatpush1.msra.mxu0 %v770
    %830 = vmatprep.subr.mxu0 0.0
    %831 = vmatpush1.msra.mxu0 %v771
    %832 = vmatprep.subr.mxu0 0.0
    %833 = vmatpush1.msra.mxu0 %v772
    %834 = vmatprep.subr.mxu0 0.0
    %835 = vmatpush1.msra.mxu0 %v773
    %836 = vmatprep.subr.mxu0 0.0
    %837 = vmatpush1.msra.mxu0 %v774
    %838 = vmatprep.subr.mxu0 0.0
    %839 = vmatpush1.msra.mxu0 %v775
    %840 = vmatprep.subr.mxu0 0.0
    %841 = vmatpush1.msra.mxu0 %v776
    %842 = vmatprep.subr.mxu0 0.0
    %843 = vmatpush1.msra.mxu0 %v777
    %844 = vmatprep.subr.mxu0 0.0
    %845 = vmatpush1.msra.mxu0 %v778
    %846 = vmatprep.subr.mxu0 0.0
    %847 = vmatpush1.msra.mxu0 %v779
    %848 = vmatprep.subr.mxu0 0.0
    %849 = vmatpush1.msra.mxu0 %v780
    %850 = vmatprep.subr.mxu0 0.0
    %851 = vmatpush1.msra.mxu0 %v781
    %852 = vmatprep.subr.mxu0 0.0
    %853 = vmatpush1.msra.mxu0 %v782
    %854 = vmatprep.mubr.f32.mxu0 %v720
    %855 = vmatmul.mubr.f32.gmra.mrb[0].mxu0 %v719
    %v856 = vpop.f32.mrb[0].mxu0
    %v857 = vadd.f32 %v788, %v856
    %v858 = vpop.f32.mrb[0].mxu0
    %859 = vmatprep.mubr.f32.mxu0 %v722
    %860 = vmatmul.mubr.f32.gmra.mrb[0].mxu0 %v721
    %v861 = vpop.f32.mrb[0].mxu0
    %v862 = vadd.f32 %v788, %v861
    %v863 = vpop.f32.mrb[0].mxu0
    %864 = vmatprep.mubr.f32.mxu0 %v724
    %865 = vmatmul.mubr.f32.gmra.mrb[0].mxu0 %v723
    %v866 = vpop.f32.mrb[0].mxu0
    %v867 = vadd.f32 %v788, %v866
    %v868 = vpop.f32.mrb[0].mxu0
    %869 = vmatprep.mubr.f32.mxu0 %v726
    %870 = vmatmul.mubr.f32.gmra.mrb[0].mxu0 %v725
    %v871 = vpop.f32.mrb[0].mxu0
    %v872 = vadd.f32 %v788, %v871
    %v873 = vpop.f32.mrb[0].mxu0
    %874 = vmatprep.mubr.f32.mxu0 %v728
    %875 = vmatmul.mubr.f32.gmra.mrb[0].mxu0 %v727
    %v876 = vpop.f32.mrb[0].mxu0
    %v877 = vadd.f32 %v788, %v876
    %v878 = vpop.f32.mrb[0].mxu0
    %879 = vmatprep.mubr.f32.mxu0 %v730
    %880 = vmatmul.mubr.f32.gmra.mrb[0].mxu0 %v729
    %v881 = vpop.f32.mrb[0].mxu0
    %v882 = vadd.f32 %v788, %v881
    %v883 = vpop.f32.mrb[0].mxu0
    %884 = vmatprep.mubr.f32.mxu0 %v732
    %885 = vmatmul.mubr.f32.gmra.mrb[0].mxu0 %v731
    %v886 = vpop.f32.mrb[0].mxu0
    %v887 = vadd.f32 %v788, %v886
    %v888 = vpop.f32.mrb[0].mxu0
    %889 = vmatprep.mubr.f32.mxu0 %v734
    %890 = vmatmul.mubr.f32.gmra.mrb[0].mxu0 %v733
    %v891 = vpop.f32.mrb[0].mxu0
    %v892 = vadd.f32 %v788, %v891
    %v893 = vpop.f32.mrb[0].mxu0
    %894 = vmatprep.mubr.f32.mxu0 %v736
    %895 = vmatmul.mubr.f32.gmra.mrb[0].mxu0 %v735
    %v896 = vpop.f32.mrb[0].mxu0
    %v897 = vadd.f32 %v788, %v896
    %v898 = vpop.f32.mrb[0].mxu0
    %899 = vmatprep.mubr.f32.mxu0 %v738
    %900 = vmatmul.mubr.f32.gmra.mrb[0].mxu0 %v737
    %v901 = vpop.f32.mrb[0].mxu0
    %v902 = vadd.f32 %v788, %v901
    %v903 = vpop.f32.mrb[0].mxu0
    %904 = vmatprep.mubr.f32.mxu0 %v740
    %905 = vmatmul.mubr.f32.gmra.mrb[0].mxu0 %v739
    %v906 = vpop.f32.mrb[0].mxu0
    %v907 = vadd.f32 %v788, %v906
    %v908 = vpop.f32.mrb[0].mxu0
    %909 = vmatprep.mubr.f32.mxu0 %v742
    %910 = vmatmul.mubr.f32.gmra.mrb[0].mxu0 %v741
    %v911 = vpop.f32.mrb[0].mxu0
    %v912 = vadd.f32 %v788, %v911
    %v913 = vpop.f32.mrb[0].mxu0
    %914 = vmatprep.mubr.f32.mxu0 %v744
    %915 = vmatmul.mubr.f32.gmra.mrb[0].mxu0 %v743
    %v916 = vpop.f32.mrb[0].mxu0
    %v917 = vadd.f32 %v788, %v916
    %v918 = vpop.f32.mrb[0].mxu0
    %919 = vmatprep.mubr.f32.mxu0 %v746
    %920 = vmatmul.mubr.f32.gmra.mrb[0].mxu0 %v745
    %v921 = vpop.f32.mrb[0].mxu0
    %v922 = vadd.f32 %v788, %v921
    %v923 = vpop.f32.mrb[0].mxu0
    %924 = vmatprep.mubr.f32.mxu0 %v748
    %925 = vmatmul.mubr.f32.gmra.mrb[0].mxu0 %v747
    %v926 = vpop.f32.mrb[0].mxu0
    %v927 = vadd.f32 %v788, %v926
    %v928 = vpop.f32.mrb[0].mxu0
    %929 = vmatprep.mubr.f32.mxu0 %v750
    %930 = vmatmul.mubr.f32.gmra.mrb[0].mxu0 %v749
    %v931 = vpop.f32.mrb[0].mxu0
    %v932 = vadd.f32 %v788, %v931
    %v933 = vpop.f32.mrb[0].mxu0
    %934 = vdwg.mxu0
    %935 = vst [vmem:[#allocation3 + $0x8] sm:$0xff] %v857
    %936 = vst [vmem:[#allocation3 + $0x18] sm:$0xff] %v862
    %937 = vst [vmem:[#allocation3 + $0x28] sm:$0xff] %v867
    %938 = vst [vmem:[#allocation3 + $0x38] sm:$0xff] %v872
    %939 = vst [vmem:[#allocation3 + $0x48] sm:$0xff] %v877
    %940 = vst [vmem:[#allocation3 + $0x58] sm:$0xff] %v882
    %941 = vst [vmem:[#allocation3 + $0x68] sm:$0xff] %v887
    %942 = vst [vmem:[#allocation3 + $0x78] sm:$0xff] %v892
    %943 = vst [vmem:[#allocation3 + $0x88] sm:$0xff] %v897
    %944 = vst [vmem:[#allocation3 + $0x98] sm:$0xff] %v902
    %945 = vst [vmem:[#allocation3 + $0xa8] sm:$0xff] %v907
    %946 = vst [vmem:[#allocation3 + $0xb8] sm:$0xff] %v912
    %947 = vst [vmem:[#allocation3 + $0xc8] sm:$0xff] %v917
    %948 = vst [vmem:[#allocation3 + $0xd8] sm:$0xff] %v922
    %949 = vst [vmem:[#allocation3 + $0xe8] sm:$0xff] %v927
    %950 = vst [vmem:[#allocation3 + $0xf8] sm:$0xff] %v932
    %v951 = vld [vmem:[#allocation9] sm:$0xff]
    %v952 = vld [vmem:[#allocation3] sm:$0xff]
    %v953 = vld [vmem:[#allocation3 + $0x8] sm:$0xff]
    %v954 = vld [vmem:[#allocation3 + $0x10] sm:$0xff]
    %v955 = vld [vmem:[#allocation3 + $0x18] sm:$0xff]
    %v956 = vld [vmem:[#allocation3 + $0x20] sm:$0xff]
    %v957 = vld [vmem:[#allocation3 + $0x28] sm:$0xff]
    %v958 = vld [vmem:[#allocation3 + $0x30] sm:$0xff]
    %v959 = vld [vmem:[#allocation3 + $0x38] sm:$0xff]
    %v960 = vld [vmem:[#allocation3 + $0x40] sm:$0xff]
    %v961 = vld [vmem:[#allocation3 + $0x48] sm:$0xff]
    %v962 = vld [vmem:[#allocation3 + $0x50] sm:$0xff]
    %v963 = vld [vmem:[#allocation3 + $0x58] sm:$0xff]
    %v964 = vld [vmem:[#allocation3 + $0x60] sm:$0xff]
    %v965 = vld [vmem:[#allocation3 + $0x68] sm:$0xff]
    %v966 = vld [vmem:[#allocation3 + $0x70] sm:$0xff]
    %v967 = vld [vmem:[#allocation3 + $0x78] sm:$0xff]
    %v968 = vld [vmem:[#allocation3 + $0x80] sm:$0xff]
    %v969 = vld [vmem:[#allocation3 + $0x88] sm:$0xff]
    %v970 = vld [vmem:[#allocation3 + $0x90] sm:$0xff]
    %v971 = vld [vmem:[#allocation3 + $0x98] sm:$0xff]
    %v972 = vld [vmem:[#allocation3 + $0xa0] sm:$0xff]
    %v973 = vld [vmem:[#allocation3 + $0xa8] sm:$0xff]
    %v974 = vld [vmem:[#allocation3 + $0xb0] sm:$0xff]
    %v975 = vld [vmem:[#allocation3 + $0xb8] sm:$0xff]
    %v976 = vld [vmem:[#allocation3 + $0xc0] sm:$0xff]
    %v977 = vld [vmem:[#allocation3 + $0xc8] sm:$0xff]
    %v978 = vld [vmem:[#allocation3 + $0xd0] sm:$0xff]
    %v979 = vld [vmem:[#allocation3 + $0xd8] sm:$0xff]
    %v980 = vld [vmem:[#allocation3 + $0xe0] sm:$0xff]
    %v981 = vld [vmem:[#allocation3 + $0xe8] sm:$0xff]
    %v982 = vld [vmem:[#allocation3 + $0xf0] sm:$0xff]
    %v983 = vld [vmem:[#allocation3 + $0xf8] sm:$0xff]
    %984 = vmatprep.subr.mxu0 %v953
    %985 = vmatpush1.msra.mxu0 %v952
    %986 = vmatprep.subr.mxu0 %v955
    %987 = vmatpush1.msra.mxu0 %v954
    %988 = vmatprep.subr.mxu0 %v957
    %989 = vmatpush1.msra.mxu0 %v956
    %990 = vmatprep.subr.mxu0 %v959
    %991 = vmatpush1.msra.mxu0 %v958
    %992 = vmatprep.subr.mxu0 %v961
    %993 = vmatpush1.msra.mxu0 %v960
    %994 = vmatprep.subr.mxu0 %v963
    %995 = vmatpush1.msra.mxu0 %v962
    %996 = vmatprep.subr.mxu0 %v965
    %997 = vmatpush1.msra.mxu0 %v964
    %998 = vmatprep.subr.mxu0 %v967
    %999 = vmatpush1.msra.mxu0 %v966
    %1000 = vmatprep.subr.mxu0 %v969
    %1001 = vmatpush1.msra.mxu0 %v968
    %1002 = vmatprep.subr.mxu0 %v971
    %1003 = vmatpush1.msra.mxu0 %v970
    %1004 = vmatprep.subr.mxu0 %v973
    %1005 = vmatpush1.msra.mxu0 %v972
    %1006 = vmatprep.subr.mxu0 %v975
    %1007 = vmatpush1.msra.mxu0 %v974
    %1008 = vmatprep.subr.mxu0 %v977
    %1009 = vmatpush1.msra.mxu0 %v976
    %1010 = vmatprep.subr.mxu0 %v979
    %1011 = vmatpush1.msra.mxu0 %v978
    %1012 = vmatprep.subr.mxu0 %v981
    %1013 = vmatpush1.msra.mxu0 %v980
    %1014 = vmatprep.subr.mxu0 %v983
    %1015 = vmatpush1.msra.mxu0 %v982
    %1016 = vmatprep.subr.mxu0 0.0
    %1017 = vmatpush1.msra.mxu0 0.0
    %1018 = vmatprep.subr.mxu0 0.0
    %1019 = vmatpush1.msra.mxu0 0.0
    %1020 = vmatprep.subr.mxu0 0.0
    %1021 = vmatpush1.msra.mxu0 0.0
    %1022 = vmatprep.subr.mxu0 0.0
    %1023 = vmatpush1.msra.mxu0 0.0
    %1024 = vmatprep.subr.mxu0 0.0
    %1025 = vmatpush1.msra.mxu0 0.0
    %1026 = vmatprep.subr.mxu0 0.0
    %1027 = vmatpush1.msra.mxu0 0.0
    %1028 = vmatprep.subr.mxu0 0.0
    %1029 = vmatpush1.msra.mxu0 0.0
    %1030 = vmatprep.subr.mxu0 0.0
    %1031 = vmatpush1.msra.mxu0 0.0
    %1032 = vmatprep.subr.mxu0 0.0
    %1033 = vmatpush1.msra.mxu0 0.0
    %1034 = vmatprep.subr.mxu0 0.0
    %1035 = vmatpush1.msra.mxu0 0.0
    %1036 = vmatprep.subr.mxu0 0.0
    %1037 = vmatpush1.msra.mxu0 0.0
    %1038 = vmatprep.subr.mxu0 0.0
    %1039 = vmatpush1.msra.mxu0 0.0
    %1040 = vmatprep.subr.mxu0 0.0
    %1041 = vmatpush1.msra.mxu0 0.0
    %1042 = vmatprep.subr.mxu0 0.0
    %1043 = vmatpush1.msra.mxu0 0.0
    %1044 = vmatprep.subr.mxu0 0.0
    %1045 = vmatpush1.msra.mxu0 0.0
    %1046 = vmatprep.subr.mxu0 0.0
    %1047 = vmatpush1.msra.mxu0 0.0
    %1048 = vmatprep.mubr.f32.mxu0 0.0
    %1049 = vmatmul.mubr.f32.gmra.mrb[0].mxu0 %v951
    %v1050 = vpop.f32.mrb[0].mxu0
    %v1051 = vadd.f32 0.0, %v1050
    %v1052 = vpop.f32.mrb[0].mxu0
    %v1053 = vadd.f32 0.0, %v1052
    %1054 = vdwg.mxu0
    %v1055 = vld [vmem:[#allocation13] sm:$0xff]
    %v1056 = vld [vmem:[#allocation13 + $0x8] sm:$0xff]
    %v1057 = vld [vmem:[#allocation13 + $0x10] sm:$0xff]
    %v1058 = vld [vmem:[#allocation13 + $0x18] sm:$0xff]
    %v1059 = vld [vmem:[#allocation13 + $0x20] sm:$0xff]
    %v1060 = vld [vmem:[#allocation13 + $0x28] sm:$0xff]
    %v1061 = vld [vmem:[#allocation13 + $0x30] sm:$0xff]
    %v1062 = vld [vmem:[#allocation13 + $0x38] sm:$0xff]
    %v1063 = vld [vmem:[#allocation13 + $0x40] sm:$0xff]
    %v1064 = vld [vmem:[#allocation13 + $0x48] sm:$0xff]
    %v1065 = vld [vmem:[#allocation13 + $0x50] sm:$0xff]
    %v1066 = vld [vmem:[#allocation13 + $0x58] sm:$0xff]
    %v1067 = vld [vmem:[#allocation13 + $0x60] sm:$0xff]
    %v1068 = vld [vmem:[#allocation13 + $0x68] sm:$0xff]
    %v1069 = vld [vmem:[#allocation13 + $0x70] sm:$0xff]
    %v1070 = vld [vmem:[#allocation13 + $0x78] sm:$0xff]
    %v1071 = vld [vmem:[#allocation13 + $0x80] sm:$0xff]
    %v1072 = vld [vmem:[#allocation13 + $0x88] sm:$0xff]
    %v1073 = vld [vmem:[#allocation13 + $0x90] sm:$0xff]
    %v1074 = vld [vmem:[#allocation13 + $0x98] sm:$0xff]
    %v1075 = vld [vmem:[#allocation13 + $0xa0] sm:$0xff]
    %v1076 = vld [vmem:[#allocation13 + $0xa8] sm:$0xff]
    %v1077 = vld [vmem:[#allocation13 + $0xb0] sm:$0xff]
    %v1078 = vld [vmem:[#allocation13 + $0xb8] sm:$0xff]
    %v1079 = vld [vmem:[#allocation13 + $0xc0] sm:$0xff]
    %v1080 = vld [vmem:[#allocation13 + $0xc8] sm:$0xff]
    %v1081 = vld [vmem:[#allocation13 + $0xd0] sm:$0xff]
    %v1082 = vld [vmem:[#allocation13 + $0xd8] sm:$0xff]
    %v1083 = vld [vmem:[#allocation13 + $0xe0] sm:$0xff]
    %v1084 = vld [vmem:[#allocation13 + $0xe8] sm:$0xff]
    %v1085 = vld [vmem:[#allocation13 + $0xf0] sm:$0xff]
    %v1086 = vld [vmem:[#allocation13 + $0xf8] sm:$0xff]
    %v1087 = vld [vmem:[%s8] sm:$0x1]
    %v1089 = vlaneseq
    %v1090 = vshrl.u32 %v1089, 7
    %v1091 = vsub.s32 0, %v1090
    %v1092 = vrot.slane %v1087, %v1091
    %1094 = vmatprep.subr.mxu0 0.0
    %1095 = vmatpush1.msra.mxu0 %v1055
    %1096 = vmatprep.subr.mxu0 0.0
    %1097 = vmatpush1.msra.mxu0 %v1056
    %1098 = vmatprep.subr.mxu0 0.0
    %1099 = vmatpush1.msra.mxu0 %v1057
    %1100 = vmatprep.subr.mxu0 0.0
    %1101 = vmatpush1.msra.mxu0 %v1058
    %1102 = vmatprep.subr.mxu0 0.0
    %1103 = vmatpush1.msra.mxu0 %v1059
    %1104 = vmatprep.subr.mxu0 0.0
    %1105 = vmatpush1.msra.mxu0 %v1060
    %1106 = vmatprep.subr.mxu0 0.0
    %1107 = vmatpush1.msra.mxu0 %v1061
    %1108 = vmatprep.subr.mxu0 0.0
    %1109 = vmatpush1.msra.mxu0 %v1062
    %1110 = vmatprep.subr.mxu0 0.0
    %1111 = vmatpush1.msra.mxu0 %v1063
    %1112 = vmatprep.subr.mxu0 0.0
    %1113 = vmatpush1.msra.mxu0 %v1064
    %1114 = vmatprep.subr.mxu0 0.0
    %1115 = vmatpush1.msra.mxu0 %v1065
    %1116 = vmatprep.subr.mxu0 0.0
    %1117 = vmatpush1.msra.mxu0 %v1066
    %1118 = vmatprep.subr.mxu0 0.0
    %1119 = vmatpush1.msra.mxu0 %v1067
    %1120 = vmatprep.subr.mxu0 0.0
    %1121 = vmatpush1.msra.mxu0 %v1068
    %1122 = vmatprep.subr.mxu0 0.0
    %1123 = vmatpush1.msra.mxu0 %v1069
    %1124 = vmatprep.subr.mxu0 0.0
    %1125 = vmatpush1.msra.mxu0 %v1070
    %1126 = vmatprep.subr.mxu0 0.0
    %1127 = vmatpush1.msra.mxu0 %v1071
    %1128 = vmatprep.subr.mxu0 0.0
    %1129 = vmatpush1.msra.mxu0 %v1072
    %1130 = vmatprep.subr.mxu0 0.0
    %1131 = vmatpush1.msra.mxu0 %v1073
    %1132 = vmatprep.subr.mxu0 0.0
    %1133 = vmatpush1.msra.mxu0 %v1074
    %1134 = vmatprep.subr.mxu0 0.0
    %1135 = vmatpush1.msra.mxu0 %v1075
    %1136 = vmatprep.subr.mxu0 0.0
    %1137 = vmatpush1.msra.mxu0 %v1076
    %1138 = vmatprep.subr.mxu0 0.0
    %1139 = vmatpush1.msra.mxu0 %v1077
    %1140 = vmatprep.subr.mxu0 0.0
    %1141 = vmatpush1.msra.mxu0 %v1078
    %1142 = vmatprep.subr.mxu0 0.0
    %1143 = vmatpush1.msra.mxu0 %v1079
    %1144 = vmatprep.subr.mxu0 0.0
    %1145 = vmatpush1.msra.mxu0 %v1080
    %1146 = vmatprep.subr.mxu0 0.0
    %1147 = vmatpush1.msra.mxu0 %v1081
    %1148 = vmatprep.subr.mxu0 0.0
    %1149 = vmatpush1.msra.mxu0 %v1082
    %1150 = vmatprep.subr.mxu0 0.0
    %1151 = vmatpush1.msra.mxu0 %v1083
    %1152 = vmatprep.subr.mxu0 0.0
    %1153 = vmatpush1.msra.mxu0 %v1084
    %1154 = vmatprep.subr.mxu0 0.0
    %1155 = vmatpush1.msra.mxu0 %v1085
    %1156 = vmatprep.subr.mxu0 0.0
    %1157 = vmatpush1.msra.mxu0 %v1086
    %1158 = vmatprep.mubr.f32.mxu0 %v1053
    %1159 = vmatmul.mubr.f32.gmra.mrb[0].mxu0 %v1051
    %v1160 = vpop.f32.mrb[0].mxu0
    %v1161 = vadd.f32 %v1092, %v1160
    %v1162 = vpop.f32.mrb[0].mxu0
    %1163 = vdwg.mxu0
    %v1164 = vmax.f32 %v1161, 0.0
    %v1165 = vld [vmem:[#allocation15] sm:$0xff]
    %v1166 = vld [vmem:[#allocation15 + $0x8] sm:$0xff]
    %v1167 = vld [vmem:[#allocation15 + $0x10] sm:$0xff]
    %v1168 = vld [vmem:[#allocation15 + $0x18] sm:$0xff]
    %v1169 = vld [vmem:[#allocation15 + $0x20] sm:$0xff]
    %v1170 = vld [vmem:[#allocation15 + $0x28] sm:$0xff]
    %v1171 = vld [vmem:[#allocation15 + $0x30] sm:$0xff]
    %v1172 = vld [vmem:[#allocation15 + $0x38] sm:$0xff]
    %v1173 = vld [vmem:[#allocation15 + $0x40] sm:$0xff]
    %v1174 = vld [vmem:[#allocation15 + $0x48] sm:$0xff]
    %v1175 = vld [vmem:[#allocation15 + $0x50] sm:$0xff]
    %v1176 = vld [vmem:[#allocation15 + $0x58] sm:$0xff]
    %v1177 = vld [vmem:[#allocation15 + $0x60] sm:$0xff]
    %v1178 = vld [vmem:[#allocation15 + $0x68] sm:$0xff]
    %v1179 = vld [vmem:[#allocation15 + $0x70] sm:$0xff]
    %v1180 = vld [vmem:[#allocation15 + $0x78] sm:$0xff]
    %v1181 = vld [vmem:[%s10] sm:$0x1]
    %v1183 = vlaneseq
    %v1184 = vshrl.u32 %v1183, 7
    %v1185 = vsub.s32 0, %v1184
    %v1186 = vrot.slane %v1181, %v1185
    %1188 = vmatprep.subr.mxu0 0.0
    %1189 = vmatpush1.msra.mxu0 %v1165
    %1190 = vmatprep.subr.mxu0 0.0
    %1191 = vmatpush1.msra.mxu0 %v1166
    %1192 = vmatprep.subr.mxu0 0.0
    %1193 = vmatpush1.msra.mxu0 %v1167
    %1194 = vmatprep.subr.mxu0 0.0
    %1195 = vmatpush1.msra.mxu0 %v1168
    %1196 = vmatprep.subr.mxu0 0.0
    %1197 = vmatpush1.msra.mxu0 %v1169
    %1198 = vmatprep.subr.mxu0 0.0
    %1199 = vmatpush1.msra.mxu0 %v1170
    %1200 = vmatprep.subr.mxu0 0.0
    %1201 = vmatpush1.msra.mxu0 %v1171
    %1202 = vmatprep.subr.mxu0 0.0
    %1203 = vmatpush1.msra.mxu0 %v1172
    %1204 = vmatprep.subr.mxu0 0.0
    %1205 = vmatpush1.msra.mxu0 %v1173
    %1206 = vmatprep.subr.mxu0 0.0
    %1207 = vmatpush1.msra.mxu0 %v1174
    %1208 = vmatprep.subr.mxu0 0.0
    %1209 = vmatpush1.msra.mxu0 %v1175
    %1210 = vmatprep.subr.mxu0 0.0
    %1211 = vmatpush1.msra.mxu0 %v1176
    %1212 = vmatprep.subr.mxu0 0.0
    %1213 = vmatpush1.msra.mxu0 %v1177
    %1214 = vmatprep.subr.mxu0 0.0
    %1215 = vmatpush1.msra.mxu0 %v1178
    %1216 = vmatprep.subr.mxu0 0.0
    %1217 = vmatpush1.msra.mxu0 %v1179
    %1218 = vmatprep.subr.mxu0 0.0
    %1219 = vmatpush1.msra.mxu0 %v1180
    %1220 = vmatprep.subr.mxu0 0.0
    %1221 = vmatpush1.msra.mxu0 0.0
    %1222 = vmatprep.subr.mxu0 0.0
    %1223 = vmatpush1.msra.mxu0 0.0
    %1224 = vmatprep.subr.mxu0 0.0
    %1225 = vmatpush1.msra.mxu0 0.0
    %1226 = vmatprep.subr.mxu0 0.0
    %1227 = vmatpush1.msra.mxu0 0.0
    %1228 = vmatprep.subr.mxu0 0.0
    %1229 = vmatpush1.msra.mxu0 0.0
    %1230 = vmatprep.subr.mxu0 0.0
    %1231 = vmatpush1.msra.mxu0 0.0
    %1232 = vmatprep.subr.mxu0 0.0
    %1233 = vmatpush1.msra.mxu0 0.0
    %1234 = vmatprep.subr.mxu0 0.0
    %1235 = vmatpush1.msra.mxu0 0.0
    %1236 = vmatprep.subr.mxu0 0.0
    %1237 = vmatpush1.msra.mxu0 0.0
    %1238 = vmatprep.subr.mxu0 0.0
    %1239 = vmatpush1.msra.mxu0 0.0
    %1240 = vmatprep.subr.mxu0 0.0
    %1241 = vmatpush1.msra.mxu0 0.0
    %1242 = vmatprep.subr.mxu0 0.0
    %1243 = vmatpush1.msra.mxu0 0.0
    %1244 = vmatprep.subr.mxu0 0.0
    %1245 = vmatpush1.msra.mxu0 0.0
    %1246 = vmatprep.subr.mxu0 0.0
    %1247 = vmatpush1.msra.mxu0 0.0
    %1248 = vmatprep.subr.mxu0 0.0
    %1249 = vmatpush1.msra.mxu0 0.0
    %1250 = vmatprep.subr.mxu0 0.0
    %1251 = vmatpush1.msra.mxu0 0.0
    %1252 = vmatprep.mubr.f32.mxu0 0.0
    %1253 = vmatmul.mubr.f32.gmra.mrb[0].mxu0 %v1164
    %v1254 = vpop.f32.mrb[0].mxu0
    %v1255 = vadd.f32 %v1186, %v1254
    %v1256 = vpop.f32.mrb[0].mxu0
    %1257 = vdwg.mxu0
    %v1258 = vxor.u32 %v1255, 2147483648
    %v1259 = vmul.f32 %v1258, 1.442695
    %v1260 = vpow.pop %v1259
    %v1261 = vadd.f32 %v1260, 1.0
    %v1262 = vrcp.pop %v1261
    %v1263 = vmul.f32 1.0, %v1262
    %1264 = vst [vmem:[#allocation16] sm:$0xff] %v1263
    // Predicated region
    $region74: #{tpu_custom_call.1} parent=1 // pred_check
      _
    $region75: #{tpu_custom_call.1} parent=1 // pred_check_branch
      %1266 = sbr.rel (0) target = $region77
    $region76: #{tpu_custom_call.1} parent=1 // pred_region
      %s1268 = ssub.s32 128, 128
      %1269 = vsyncadd [#allocation6], %s1268
      %s1271 = sshll.u32 [#allocation16], 4
      %s1272 = int_to_ptr.vmem [resolvable:$true] %s1271
      %1274 = dma.vmem_to_hbm [thread:$0]  %s1272, 128, %s11, [#allocation6]
    $region77: #{tpu_custom_call.1} parent=1 // pred_fallthru
      _
    // Predicated region
    $region78: #{tpu_custom_call.1} parent=1 // pred_check
      _
    $region79: #{tpu_custom_call.1} parent=1 // pred_check_branch
      %1276 = sbr.rel (0) target = $region81
    $region80: #{tpu_custom_call.1} parent=1 // pred_region
      %1277 = dma.done [#allocation6], 128
    $region81: #{tpu_custom_call.1} parent=1 // pred_fallthru
      _
    %1278 = vsyncpa [#allocation5], 1
    %1279 = vsyncpa [#allocation8], 1
    %1280 = vsyncpa [#allocation11], 1
    %1281 = vsyncpa [#allocation14], 1
    %1282 = vsyncpa [#allocation6], 1

</llo_original>
